<compile_context>
chip_gen: v7x
topology: tpu7x:2x2x1
jax: 0.10.0
libtpu: 0.0.40
codegen_flags: <defaults>
</compile_context>

<pallas_src>
import jax
import jax.numpy as jnp
from jax.experimental import pallas as pl
from jax.experimental.pallas import tpu as pltpu


def dqn_kernel(x_ref, w1_ref, w2_ref, w3_ref, w4_ref, b_ref, out_ref):
    """fc1->relu->fc2->relu->fc3->relu->fc4 on one (packed) batch tile.

    The kernel is agnostic to the row-packing: the wrapper has already folded
    P batch rows into each LHS row and made the weights block-diagonal, so the
    body is just 4 MXU dots + VPU bias/ReLU on the f32 accumulator.
    """
    wdt = w1_ref.dtype
    n1 = w1_ref.shape[1]
    n2 = w2_ref.shape[1]
    n3 = w3_ref.shape[1]
    n4 = w4_ref.shape[1]
    b = b_ref[...]  # (4, maxw) f32, rows zero-padded on the right

    h = jnp.dot(x_ref[...], w1_ref[...], preferred_element_type=jnp.float32)
    h = jnp.maximum(h + b[0:1, :n1], 0.0)

    h = jnp.dot(h.astype(wdt), w2_ref[...], preferred_element_type=jnp.float32)
    h = jnp.maximum(h + b[1:2, :n2], 0.0)

    h = jnp.dot(h.astype(wdt), w3_ref[...], preferred_element_type=jnp.float32)
    h = jnp.maximum(h + b[2:3, :n3], 0.0)

    q = jnp.dot(h.astype(wdt), w4_ref[...], preferred_element_type=jnp.float32)
    out_ref[...] = (q + b[3:4, :n4]).astype(out_ref.dtype)


def dqn_forward(state, params, *, pack=16, block_b=1024,
                compute_dtype=jnp.float32):
    """Row-packed, batch-tiled Pallas DQN forward.

    state:  [B, state_size]
    params: as produced by init_dqn_params (weights stored [in, out]).
    pack:   P batch rows folded per super-row. P=16 fills the 256-wide MXU on
            v6e/v7x (and makes the output 128-lane dense for action_size=8);
            use P=8 on v5e's 128-wide MXU.
    block_b: packed rows per grid step (sweep upward on v6e/v7x with
            vmem_limit_bytes headroom).
    compute_dtype: float32 or bfloat16 for the streamed state / weights;
            accumulation, bias add and ReLU are always f32.
    """
    w1, b1, w2, b2, w3, b3, w4, b4 = params
    B, state_size = state.shape
    action_size = w4.shape[1]
    P = max(1, int(pack))

    # --- pack P rows per super-row (pad only the small tail to a multiple of P)
    Bp = pl.cdiv(B, P) * P
    x = state
    if Bp != B:
        x = jnp.pad(x, ((0, Bp - B), (0, 0)))
    rows = Bp // P
    x = x.reshape(rows, P * state_size)

    # --- block-diagonal weights + P-tiled biases.
    # Weights are tiny (<~2.5 MiB total at P=16); for a fixed policy network
    # the caller should hoist/cache these packed operands across calls.
    def bdiag(w):
        return jnp.kron(jnp.eye(P, dtype=w.dtype), w)  # [P*in, P*out]

    w1p, w2p, w3p, w4p = (bdiag(w) for w in (w1, w2, w3, w4))

    maxw = max(w.shape[1] for w in (w1p, w2p, w3p, w4p))

    def packrow(bv):
        bv = jnp.tile(bv.reshape(1, -1).astype(jnp.float32), (1, P))
        return jnp.pad(bv, ((0, 0), (0, maxw - bv.shape[1])))

    b_packed = jnp.concatenate(
        [packrow(b1), packrow(b2), packrow(b3), packrow(b4)], axis=0)

    # Optional bf16 streaming of the packed operands (v6e/v7x).
    x = x.astype(compute_dtype)
    w1c, w2c, w3c, w4c = (w.astype(compute_dtype)
                          for w in (w1p, w2p, w3p, w4p))

    # --- batch tiling over packed rows; a partial last block is fine (no
    # cross-row reduction: garbage pad rows never touch valid rows and OOB
    # output rows are masked on store).
    tb = min(block_b, rows)
    if tb < rows:
        tb = max(8, (tb // 8) * 8)  # sublane-aligned tiles when multi-step
    grid = (pl.cdiv(rows, tb),)

    full = lambda a: pl.BlockSpec(a.shape, lambda i: (0,) * a.ndim)

    out = pl.pallas_call(
        dqn_kernel,
        out_shape=jax.ShapeDtypeStruct((rows, P * action_size), jnp.float32),
        grid=grid,
        in_specs=[pl.BlockSpec((tb, P * state_size), lambda i: (i, 0)),
                  full(w1c), full(w2c), full(w3c), full(w4c),
                  full(b_packed)],
        out_specs=pl.BlockSpec((tb, P * action_size), lambda i: (i, 0)),
        compiler_params=pltpu.CompilerParams(
            dimension_semantics=("parallel",)),
    )(x, w1c, w2c, w3c, w4c, b_packed)

    # Unpack super-rows back to [B, action_size] (free row-major reshape).
    return out.reshape(Bp, action_size)[:B]


def xavier_uniform(key, fan_in, fan_out, dtype=jnp.float32):
    bound = (6.0 / (fan_in + fan_out)) ** 0.5
    # stored as [in, out] so the kernel computes x @ W
    return jax.random.uniform(key, (fan_in, fan_out), dtype, -bound, bound)


def init_dqn_params(key, state_size, action_size, hidden_size=32):
    """Matches the PyTorch module's _init_weights: xavier_uniform_ weights,
    biases filled with 0.01."""
    k1, k2, k3, k4 = jax.random.split(key, 4)
    h2 = hidden_size // 2
    w1 = xavier_uniform(k1, state_size, hidden_size)
    w2 = xavier_uniform(k2, hidden_size, hidden_size)
    w3 = xavier_uniform(k3, hidden_size, h2)
    w4 = xavier_uniform(k4, h2, action_size)
    b1 = jnp.full((1, hidden_size), 0.01, jnp.float32)
    b2 = jnp.full((1, hidden_size), 0.01, jnp.float32)
    b3 = jnp.full((1, h2), 0.01, jnp.float32)
    b4 = jnp.full((1, action_size), 0.01, jnp.float32)
    return (w1, b1, w2, b2, w3, b3, w4, b4)


def dqn_reference(state, params):
    """Pure-JAX reference for correctness checking."""
    w1, b1, w2, b2, w3, b3, w4, b4 = params
    h = jnp.maximum(state @ w1 + b1, 0.0)
    h = jnp.maximum(h @ w2 + b2, 0.0)
    h = jnp.maximum(h @ w3 + b3, 0.0)
    return h @ w4 + b4


if __name__ == "__main__":
    key = jax.random.PRNGKey(0)
    k_param, k_state = jax.random.split(key)

    batch = 8
    state_size = 16
    action_size = 8
    hidden_size = 32

    params = init_dqn_params(k_param, state_size, action_size, hidden_size)
    state = jax.random.normal(k_state, (batch, state_size), jnp.float32)
    q_ref = dqn_reference(state, params)

    # 1) f32 path, default P=16 packing (MXU-wide dots, 128-lane-dense output).
    q_values = jax.block_until_ready(dqn_forward(state, params))
    assert q_values.shape == (batch, action_size)
    assert jnp.allclose(q_values, q_ref, atol=1e-4, rtol=1e-4), "f32 mismatch"

    # 2) Multi-step grid + ragged batch (tail pad to multiple of P, partial
    #    last block): batch=83, P=4, tb=8 -> grid of 3 with a partial tile.
    state2 = jax.random.normal(jax.random.PRNGKey(1), (83, state_size),
                               jnp.float32)
    q2 = jax.block_until_ready(
        dqn_forward(state2, params, pack=4, block_b=8))
    q2_ref = dqn_reference(state2, params)
    assert q2.shape == (83, action_size)
    assert jnp.allclose(q2, q2_ref, atol=1e-4, rtol=1e-4), "grid/pad mismatch"

    # 3) Unpacked fallback (P=1) still works.
    q3 = jax.block_until_ready(
        dqn_forward(state2, params, pack=1, block_b=8))
    assert jnp.allclose(q3, q2_ref, atol=1e-4, rtol=1e-4), "P=1 mismatch"

    # 4) bf16 streaming of packed operands (v6e/v7x), f32 accumulation.
    #    Note: activations are re-cast to bf16 at every layer boundary, so
    #    rounding compounds across 4 layers -> loose tolerance; fine for DQN
    #    inference, not for training-target precision.
    q_bf16 = jax.block_until_ready(
        dqn_forward(state, params, compute_dtype=jnp.bfloat16))
    assert q_bf16.shape == (batch, action_size)
    assert bool(jnp.all(jnp.isfinite(q_bf16)))
    assert jnp.allclose(q_bf16, q_ref, atol=0.2, rtol=0.1), "bf16 mismatch"

    print("KERNEL_OK")
</pallas_src>

<mosaic_0001>
module attributes {stable_mosaic.version = 11 : i64} {
  func.func @dqn_kernel(%arg0: i32, %arg1: memref<1x256xf32, #tpu.memory_space<vmem>>, %arg2: memref<256x512xf32, #tpu.memory_space<vmem>>, %arg3: memref<512x512xf32, #tpu.memory_space<vmem>>, %arg4: memref<512x256xf32, #tpu.memory_space<vmem>>, %arg5: memref<256x128xf32, #tpu.memory_space<vmem>>, %arg6: memref<4x512xf32, #tpu.memory_space<vmem>>, %arg7: memref<1x128xf32, #tpu.memory_space<vmem>>) attributes {dimension_semantics = [#tpu.dimension_semantics<parallel>], iteration_bounds = array<i64: 1>, scalar_prefetch = 0 : i64, scratch_operands = 0 : i64, tpu.core_type = #tpu.core_type<tc>, window_params = [{transform_indices = @transform_0, window_bounds = array<i64: 1, 256>}, {pipeline_mode = #tpu.pipeline_mode<synchronous>, transform_indices = @transform_1, window_bounds = array<i64: 256, 512>}, {pipeline_mode = #tpu.pipeline_mode<synchronous>, transform_indices = @transform_2, window_bounds = array<i64: 512, 512>}, {pipeline_mode = #tpu.pipeline_mode<synchronous>, transform_indices = @transform_3, window_bounds = array<i64: 512, 256>}, {pipeline_mode = #tpu.pipeline_mode<synchronous>, transform_indices = @transform_4, window_bounds = array<i64: 256, 128>}, {pipeline_mode = #tpu.pipeline_mode<synchronous>, transform_indices = @transform_5, window_bounds = array<i64: 4, 512>}, {transform_indices = @transform_6, window_bounds = array<i64: 1, 128>}]} {
    %c0 = arith.constant 0 : index
    %c0_0 = arith.constant 0 : index
    %0 = vector.load %arg6[%c0, %c0_0] : memref<4x512xf32, #tpu.memory_space<vmem>>, vector<4x512xf32>
    %c0_1 = arith.constant 0 : index
    %c0_2 = arith.constant 0 : index
    %1 = vector.load %arg1[%c0_1, %c0_2] : memref<1x256xf32, #tpu.memory_space<vmem>>, vector<1x256xf32>
    %c0_3 = arith.constant 0 : index
    %c0_4 = arith.constant 0 : index
    %2 = vector.load %arg2[%c0_3, %c0_4] : memref<256x512xf32, #tpu.memory_space<vmem>>, vector<256x512xf32>
    %cst = arith.constant dense<0.000000e+00> : vector<1x512xf32>
    %3 = tpu.matmul %1, %2, %cst {dimension_numbers = #tpu.dot_dimension_numbers<[1], [0], [0], [1], [0, 0, 1, 1], [], []>} : vector<1x256xf32>, vector<256x512xf32>, vector<1x512xf32> -> vector<1x512xf32>
    %4 = vector.extract_strided_slice %0 {offsets = [0, 0], sizes = [1, 512], strides = [1, 1]} : vector<4x512xf32> to vector<1x512xf32>
    %5 = arith.addf %3, %4 : vector<1x512xf32>
    %cst_5 = arith.constant 0.000000e+00 : f32
    %6 = vector.broadcast %cst_5 : f32 to vector<1x512xf32>
    %7 = arith.maximumf %5, %6 : vector<1x512xf32>
    %c0_6 = arith.constant 0 : index
    %c0_7 = arith.constant 0 : index
    %8 = vector.load %arg3[%c0_6, %c0_7] : memref<512x512xf32, #tpu.memory_space<vmem>>, vector<512x512xf32>
    %cst_8 = arith.constant dense<0.000000e+00> : vector<1x512xf32>
    %9 = tpu.matmul %7, %8, %cst_8 {dimension_numbers = #tpu.dot_dimension_numbers<[1], [0], [0], [1], [0, 0, 1, 1], [], []>} : vector<1x512xf32>, vector<512x512xf32>, vector<1x512xf32> -> vector<1x512xf32>
    %10 = vector.extract_strided_slice %0 {offsets = [1, 0], sizes = [1, 512], strides = [1, 1]} : vector<4x512xf32> to vector<1x512xf32>
    %11 = arith.addf %9, %10 : vector<1x512xf32>
    %cst_9 = arith.constant 0.000000e+00 : f32
    %12 = vector.broadcast %cst_9 : f32 to vector<1x512xf32>
    %13 = arith.maximumf %11, %12 : vector<1x512xf32>
    %c0_10 = arith.constant 0 : index
    %c0_11 = arith.constant 0 : index
    %14 = vector.load %arg4[%c0_10, %c0_11] : memref<512x256xf32, #tpu.memory_space<vmem>>, vector<512x256xf32>
    %cst_12 = arith.constant dense<0.000000e+00> : vector<1x256xf32>
    %15 = tpu.matmul %13, %14, %cst_12 {dimension_numbers = #tpu.dot_dimension_numbers<[1], [0], [0], [1], [0, 0, 1, 1], [], []>} : vector<1x512xf32>, vector<512x256xf32>, vector<1x256xf32> -> vector<1x256xf32>
    %16 = vector.extract_strided_slice %0 {offsets = [2, 0], sizes = [1, 256], strides = [1, 1]} : vector<4x512xf32> to vector<1x256xf32>
    %17 = arith.addf %15, %16 : vector<1x256xf32>
    %cst_13 = arith.constant 0.000000e+00 : f32
    %18 = vector.broadcast %cst_13 : f32 to vector<1x256xf32>
    %19 = arith.maximumf %17, %18 : vector<1x256xf32>
    %c0_14 = arith.constant 0 : index
    %c0_15 = arith.constant 0 : index
    %20 = vector.load %arg5[%c0_14, %c0_15] : memref<256x128xf32, #tpu.memory_space<vmem>>, vector<256x128xf32>
    %cst_16 = arith.constant dense<0.000000e+00> : vector<1x128xf32>
    %21 = tpu.matmul %19, %20, %cst_16 {dimension_numbers = #tpu.dot_dimension_numbers<[1], [0], [0], [1], [0, 0, 1, 1], [], []>} : vector<1x256xf32>, vector<256x128xf32>, vector<1x128xf32> -> vector<1x128xf32>
    %22 = vector.extract_strided_slice %0 {offsets = [3, 0], sizes = [1, 128], strides = [1, 1]} : vector<4x512xf32> to vector<1x128xf32>
    %23 = arith.addf %21, %22 : vector<1x128xf32>
    %c0_17 = arith.constant 0 : index
    %c0_18 = arith.constant 0 : index
    %24 = vector.load %arg7[%c0_17, %c0_18] : memref<1x128xf32, #tpu.memory_space<vmem>>, vector<1x128xf32>
    tpu.vector_store %arg7[%c0_17, %c0_18], %23 {strides = array<i32>} : memref<1x128xf32, #tpu.memory_space<vmem>>, vector<1x128xf32>,
    return
  }
  func.func @transform_0(%arg0: i32) -> (i32, i32) {
    %c0_i32 = arith.constant 0 : i32
    %c0_i32_0 = arith.constant 0 : i32
    return %arg0, %c0_i32 : i32, i32
  }
  func.func @transform_1(%arg0: i32) -> (i32, i32) {
    %c0_i32 = arith.constant 0 : i32
    %c0_i32_0 = arith.constant 0 : i32
    %c0_i32_1 = arith.constant 0 : i32
    return %c0_i32, %c0_i32_0 : i32, i32
  }
  func.func @transform_2(%arg0: i32) -> (i32, i32) {
    %c0_i32 = arith.constant 0 : i32
    %c0_i32_0 = arith.constant 0 : i32
    %c0_i32_1 = arith.constant 0 : i32
    return %c0_i32, %c0_i32_0 : i32, i32
  }
  func.func @transform_3(%arg0: i32) -> (i32, i32) {
    %c0_i32 = arith.constant 0 : i32
    %c0_i32_0 = arith.constant 0 : i32
    %c0_i32_1 = arith.constant 0 : i32
    return %c0_i32, %c0_i32_0 : i32, i32
  }
  func.func @transform_4(%arg0: i32) -> (i32, i32) {
    %c0_i32 = arith.constant 0 : i32
    %c0_i32_0 = arith.constant 0 : i32
    %c0_i32_1 = arith.constant 0 : i32
    return %c0_i32, %c0_i32_0 : i32, i32
  }
  func.func @transform_5(%arg0: i32) -> (i32, i32) {
    %c0_i32 = arith.constant 0 : i32
    %c0_i32_0 = arith.constant 0 : i32
    %c0_i32_1 = arith.constant 0 : i32
    return %c0_i32, %c0_i32_0 : i32, i32
  }
  func.func @transform_6(%arg0: i32) -> (i32, i32) {
    %c0_i32 = arith.constant 0 : i32
    %c0_i32_0 = arith.constant 0 : i32
    return %arg0, %c0_i32 : i32, i32
  }
}

</mosaic_0001>

<llo_original>
// kernel: tpu_custom_call.1
$region0: #{tpu_custom_call.1}
  #allocation0 [shape = 'u32[]', space=smem, size = 0x4, offset = 0x4, fixed_abs, tag = 'smem constant byte address 0x4 - core index']
  #allocation1 [shape = 'u32[144,128]{1,0:T(1,128)}', space=vmem, size = 0x12000, scoped, tag = 'internal scratch']
  %s0 = inlined_call_operand.hbm [shape: f32[1,256], index: 0, kind: input, shape index: {}]
  %s1 = inlined_call_operand.hbm [shape: f32[256,512], index: 1, kind: input, shape index: {}]
  %s2 = inlined_call_operand.hbm [shape: f32[512,512], index: 2, kind: input, shape index: {}]
  %s3 = inlined_call_operand.hbm [shape: f32[512,256], index: 3, kind: input, shape index: {}]
  %s4 = inlined_call_operand.hbm [shape: f32[256,128], index: 4, kind: input, shape index: {}]
  %s5 = inlined_call_operand.vmem [shape: f32[4,512], index: 5, kind: input, shape index: {}]
  %s6 = inlined_call_operand.hbm [shape: f32[1,128], index: 6, kind: output, shape index: {}]
  %s7 = sld [smem:[#allocation0]]
  $region54: #{tpu_custom_call.1} parent=0
    _
  %s9 = ssub.s32 1, %s7
  %s10 = scalar_select 0, %s9, %s7
  $region1: #{tpu_custom_call.1} parent=0
    #allocation2 [shape = 'u8[1024]{0}', space=vmem, size = 0x400, scoped, tag = 'input window, operand 0, single buffered']
    #allocation3 [shape = 's32[1]{0}', space=sflag, size = 0x4, scoped, tag = 'scoped memory for tpu_custom_call.1']
    #allocation4 [shape = 's32[1]{0}', space=sflag, size = 0x4, scoped, tag = 'scoped memory for tpu_custom_call.1']
    #allocation5 [shape = 'u8[524288]{0}', space=vmem, size = 0x80000, scoped, tag = 'input window, operand 1, single buffered']
    #allocation6 [shape = 's32[1]{0}', space=sflag, size = 0x4, scoped, tag = 'scoped memory for tpu_custom_call.1']
    #allocation7 [shape = 'u8[1048576]{0}', space=vmem, size = 0x100000, scoped, tag = 'input window, operand 2, single buffered']
    #allocation8 [shape = 'u8[524288]{0}', space=vmem, size = 0x80000, scoped, tag = 'input window, operand 3, single buffered']
    #allocation9 [shape = 's32[1]{0}', space=sflag, size = 0x4, scoped, tag = 'scoped memory for tpu_custom_call.1']
    #allocation10 [shape = 'u8[131072]{0}', space=vmem, size = 0x20000, scoped, tag = 'input window, operand 4, single buffered']
    #allocation11 [shape = 'u8[512]{0}', space=vmem, size = 0x400, scoped, tag = 'output window, operand 0, single buffered']
    %11 = vsyncpa [#allocation3], 0
    %12 = vsyncpa [#allocation6], 0
    %13 = vsyncpa [#allocation9], 0
    %14 = vsyncpa [#allocation4], 0
    // Predicated region
    $region2: #{tpu_custom_call.1} parent=1 // pred_check
      _
    $region3: #{tpu_custom_call.1} parent=1 // pred_check_branch
      %16 = sbr.rel (0) target = $region5
    $region4: #{tpu_custom_call.1} parent=1 // pred_region
      %s18 = ssub.s32 32, 32
      %19 = vsyncadd [#allocation3], %s18
      %s21 = sshll.u32 [#allocation2], 4
      %s22 = int_to_ptr.vmem [resolvable:$true] %s21
      %24 = dma.hbm_to_vmem [thread:$0]  %s0, 32, %s22, [#allocation3]
    $region5: #{tpu_custom_call.1} parent=1 // pred_fallthru
      _
    // Predicated region
    $region6: #{tpu_custom_call.1} parent=1 // pred_check
      _
    $region7: #{tpu_custom_call.1} parent=1 // pred_check_branch
      %26 = sbr.rel (0) target = $region9
    $region8: #{tpu_custom_call.1} parent=1 // pred_region
      %s28 = ssub.s32 16384, 16384
      %29 = vsyncadd [#allocation6], %s28
      %s30 = sshll.u32 [#allocation5], 4
      %s31 = int_to_ptr.vmem [resolvable:$true] %s30
      %36 = dma.hbm_to_vmem [thread:$0]  %s1, 16384, %s31, [#allocation6], 512, 512, 32
    $region9: #{tpu_custom_call.1} parent=1 // pred_fallthru
      _
    // Predicated region
    $region10: #{tpu_custom_call.1} parent=1 // pred_check
      _
    $region11: #{tpu_custom_call.1} parent=1 // pred_check_branch
      %38 = sbr.rel (0) target = $region13
    $region12: #{tpu_custom_call.1} parent=1 // pred_region
      %s40 = ssub.s32 32768, 32768
      %41 = vsyncadd [#allocation6], %s40
      %s42 = sshll.u32 [#allocation7], 4
      %s43 = int_to_ptr.vmem [resolvable:$true] %s42
      %48 = dma.hbm_to_vmem [thread:$0]  %s2, 32768, %s43, [#allocation6], 512, 512, 32
    $region13: #{tpu_custom_call.1} parent=1 // pred_fallthru
      _
    // Predicated region
    $region14: #{tpu_custom_call.1} parent=1 // pred_check
      _
    $region15: #{tpu_custom_call.1} parent=1 // pred_check_branch
      %50 = sbr.rel (0) target = $region17
    $region16: #{tpu_custom_call.1} parent=1 // pred_region
      %s52 = ssub.s32 16384, 16384
      %53 = vsyncadd [#allocation9], %s52
      %s54 = sshll.u32 [#allocation8], 4
      %s55 = int_to_ptr.vmem [resolvable:$true] %s54
      %60 = dma.hbm_to_vmem [thread:$0]  %s3, 16384, %s55, [#allocation9], 256, 256, 16
    $region17: #{tpu_custom_call.1} parent=1 // pred_fallthru
      _
    // Predicated region
    $region18: #{tpu_custom_call.1} parent=1 // pred_check
      _
    $region19: #{tpu_custom_call.1} parent=1 // pred_check_branch
      %62 = sbr.rel (0) target = $region21
    $region20: #{tpu_custom_call.1} parent=1 // pred_region
      %s64 = ssub.s32 4096, 4096
      %65 = vsyncadd [#allocation9], %s64
      %s66 = sshll.u32 [#allocation10], 4
      %s67 = int_to_ptr.vmem [resolvable:$true] %s66
      %72 = dma.hbm_to_vmem [thread:$0]  %s4, 4096, %s67, [#allocation9], 128, 128, 8
    $region21: #{tpu_custom_call.1} parent=1 // pred_fallthru
      _
    // Predicated region
    $region22: #{tpu_custom_call.1} parent=1 // pred_check
      _
    $region23: #{tpu_custom_call.1} parent=1 // pred_check_branch
      %74 = sbr.rel (0) target = $region25
    $region24: #{tpu_custom_call.1} parent=1 // pred_region
      _
    $region25: #{tpu_custom_call.1} parent=1 // pred_fallthru
      _
    // Predicated region
    $region26: #{tpu_custom_call.1} parent=1 // pred_check
      _
    $region27: #{tpu_custom_call.1} parent=1 // pred_check_branch
      %76 = sbr.rel (0) target = $region29
    $region28: #{tpu_custom_call.1} parent=1 // pred_region
      %77 = dma.done [#allocation3], 32
    $region29: #{tpu_custom_call.1} parent=1 // pred_fallthru
      _
    // Predicated region
    $region30: #{tpu_custom_call.1} parent=1 // pred_check
      _
    $region31: #{tpu_custom_call.1} parent=1 // pred_check_branch
      %79 = sbr.rel (0) target = $region33
    $region32: #{tpu_custom_call.1} parent=1 // pred_region
      %80 = dma.done [#allocation6], 16384
    $region33: #{tpu_custom_call.1} parent=1 // pred_fallthru
      _
    // Predicated region
    $region34: #{tpu_custom_call.1} parent=1 // pred_check
      _
    $region35: #{tpu_custom_call.1} parent=1 // pred_check_branch
      %82 = sbr.rel (0) target = $region37
    $region36: #{tpu_custom_call.1} parent=1 // pred_region
      %83 = dma.done [#allocation6], 32768
    $region37: #{tpu_custom_call.1} parent=1 // pred_fallthru
      _
    // Predicated region
    $region38: #{tpu_custom_call.1} parent=1 // pred_check
      _
    $region39: #{tpu_custom_call.1} parent=1 // pred_check_branch
      %85 = sbr.rel (0) target = $region41
    $region40: #{tpu_custom_call.1} parent=1 // pred_region
      %86 = dma.done [#allocation9], 16384
    $region41: #{tpu_custom_call.1} parent=1 // pred_fallthru
      _
    // Predicated region
    $region42: #{tpu_custom_call.1} parent=1 // pred_check
      _
    $region43: #{tpu_custom_call.1} parent=1 // pred_check_branch
      %88 = sbr.rel (0) target = $region45
    $region44: #{tpu_custom_call.1} parent=1 // pred_region
      %89 = dma.done [#allocation9], 4096
    $region45: #{tpu_custom_call.1} parent=1 // pred_fallthru
      _
    %v90 = vld [vmem:[%s5] sm:$0xff]
    %v91 = vld [vmem:[%s5 + $0x8] sm:$0xff]
    %v92 = vld [vmem:[#allocation2] sm:$0x3]
    %v93 = vld [vmem:[#allocation5] sm:$0xff]
    %v94 = vld [vmem:[#allocation5 + $0x8] sm:$0xff]
    %v95 = vld [vmem:[#allocation5 + $0x10] sm:$0xff]
    %v96 = vld [vmem:[#allocation5 + $0x18] sm:$0xff]
    %v97 = vld [vmem:[#allocation5 + $0x20] sm:$0xff]
    %v98 = vld [vmem:[#allocation5 + $0x28] sm:$0xff]
    %v99 = vld [vmem:[#allocation5 + $0x30] sm:$0xff]
    %v100 = vld [vmem:[#allocation5 + $0x38] sm:$0xff]
    %v101 = vld [vmem:[#allocation5 + $0x40] sm:$0xff]
    %v102 = vld [vmem:[#allocation5 + $0x48] sm:$0xff]
    %v103 = vld [vmem:[#allocation5 + $0x50] sm:$0xff]
    %v104 = vld [vmem:[#allocation5 + $0x58] sm:$0xff]
    %v105 = vld [vmem:[#allocation5 + $0x60] sm:$0xff]
    %v106 = vld [vmem:[#allocation5 + $0x68] sm:$0xff]
    %v107 = vld [vmem:[#allocation5 + $0x70] sm:$0xff]
    %v108 = vld [vmem:[#allocation5 + $0x78] sm:$0xff]
    %v109 = vld [vmem:[#allocation5 + $0x80] sm:$0xff]
    %v110 = vld [vmem:[#allocation5 + $0x88] sm:$0xff]
    %v111 = vld [vmem:[#allocation5 + $0x90] sm:$0xff]
    %v112 = vld [vmem:[#allocation5 + $0x98] sm:$0xff]
    %v113 = vld [vmem:[#allocation5 + $0xa0] sm:$0xff]
    %v114 = vld [vmem:[#allocation5 + $0xa8] sm:$0xff]
    %v115 = vld [vmem:[#allocation5 + $0xb0] sm:$0xff]
    %v116 = vld [vmem:[#allocation5 + $0xb8] sm:$0xff]
    %v117 = vld [vmem:[#allocation5 + $0xc0] sm:$0xff]
    %v118 = vld [vmem:[#allocation5 + $0xc8] sm:$0xff]
    %v119 = vld [vmem:[#allocation5 + $0xd0] sm:$0xff]
    %v120 = vld [vmem:[#allocation5 + $0xd8] sm:$0xff]
    %v121 = vld [vmem:[#allocation5 + $0xe0] sm:$0xff]
    %v122 = vld [vmem:[#allocation5 + $0xe8] sm:$0xff]
    %v123 = vld [vmem:[#allocation5 + $0xf0] sm:$0xff]
    %v124 = vld [vmem:[#allocation5 + $0xf8] sm:$0xff]
    %v125 = vld [vmem:[#allocation5 + $0x100] sm:$0xff]
    %v126 = vld [vmem:[#allocation5 + $0x108] sm:$0xff]
    %v127 = vld [vmem:[#allocation5 + $0x110] sm:$0xff]
    %v128 = vld [vmem:[#allocation5 + $0x118] sm:$0xff]
    %v129 = vld [vmem:[#allocation5 + $0x120] sm:$0xff]
    %v130 = vld [vmem:[#allocation5 + $0x128] sm:$0xff]
    %v131 = vld [vmem:[#allocation5 + $0x130] sm:$0xff]
    %v132 = vld [vmem:[#allocation5 + $0x138] sm:$0xff]
    %v133 = vld [vmem:[#allocation5 + $0x140] sm:$0xff]
    %v134 = vld [vmem:[#allocation5 + $0x148] sm:$0xff]
    %v135 = vld [vmem:[#allocation5 + $0x150] sm:$0xff]
    %v136 = vld [vmem:[#allocation5 + $0x158] sm:$0xff]
    %v137 = vld [vmem:[#allocation5 + $0x160] sm:$0xff]
    %v138 = vld [vmem:[#allocation5 + $0x168] sm:$0xff]
    %v139 = vld [vmem:[#allocation5 + $0x170] sm:$0xff]
    %v140 = vld [vmem:[#allocation5 + $0x178] sm:$0xff]
    %v141 = vld [vmem:[#allocation5 + $0x180] sm:$0xff]
    %v142 = vld [vmem:[#allocation5 + $0x188] sm:$0xff]
    %v143 = vld [vmem:[#allocation5 + $0x190] sm:$0xff]
    %v144 = vld [vmem:[#allocation5 + $0x198] sm:$0xff]
    %v145 = vld [vmem:[#allocation5 + $0x1a0] sm:$0xff]
    %v146 = vld [vmem:[#allocation5 + $0x1a8] sm:$0xff]
    %v147 = vld [vmem:[#allocation5 + $0x1b0] sm:$0xff]
    %v148 = vld [vmem:[#allocation5 + $0x1b8] sm:$0xff]
    %v149 = vld [vmem:[#allocation5 + $0x1c0] sm:$0xff]
    %v150 = vld [vmem:[#allocation5 + $0x1c8] sm:$0xff]
    %v151 = vld [vmem:[#allocation5 + $0x1d0] sm:$0xff]
    %v152 = vld [vmem:[#allocation5 + $0x1d8] sm:$0xff]
    %v153 = vld [vmem:[#allocation5 + $0x1e0] sm:$0xff]
    %v154 = vld [vmem:[#allocation5 + $0x1e8] sm:$0xff]
    %v155 = vld [vmem:[#allocation5 + $0x1f0] sm:$0xff]
    %v156 = vld [vmem:[#allocation5 + $0x1f8] sm:$0xff]
    %v157 = vld [vmem:[#allocation5 + $0x200] sm:$0xff]
    %v158 = vld [vmem:[#allocation5 + $0x208] sm:$0xff]
    %v159 = vld [vmem:[#allocation5 + $0x210] sm:$0xff]
    %v160 = vld [vmem:[#allocation5 + $0x218] sm:$0xff]
    %v161 = vld [vmem:[#allocation5 + $0x220] sm:$0xff]
    %v162 = vld [vmem:[#allocation5 + $0x228] sm:$0xff]
    %v163 = vld [vmem:[#allocation5 + $0x230] sm:$0xff]
    %v164 = vld [vmem:[#allocation5 + $0x238] sm:$0xff]
    %v165 = vld [vmem:[#allocation5 + $0x240] sm:$0xff]
    %v166 = vld [vmem:[#allocation5 + $0x248] sm:$0xff]
    %v167 = vld [vmem:[#allocation5 + $0x250] sm:$0xff]
    %v168 = vld [vmem:[#allocation5 + $0x258] sm:$0xff]
    %v169 = vld [vmem:[#allocation5 + $0x260] sm:$0xff]
    %v170 = vld [vmem:[#allocation5 + $0x268] sm:$0xff]
    %v171 = vld [vmem:[#allocation5 + $0x270] sm:$0xff]
    %v172 = vld [vmem:[#allocation5 + $0x278] sm:$0xff]
    %v173 = vld [vmem:[#allocation5 + $0x280] sm:$0xff]
    %v174 = vld [vmem:[#allocation5 + $0x288] sm:$0xff]
    %v175 = vld [vmem:[#allocation5 + $0x290] sm:$0xff]
    %v176 = vld [vmem:[#allocation5 + $0x298] sm:$0xff]
    %v177 = vld [vmem:[#allocation5 + $0x2a0] sm:$0xff]
    %v178 = vld [vmem:[#allocation5 + $0x2a8] sm:$0xff]
    %v179 = vld [vmem:[#allocation5 + $0x2b0] sm:$0xff]
    %v180 = vld [vmem:[#allocation5 + $0x2b8] sm:$0xff]
    %v181 = vld [vmem:[#allocation5 + $0x2c0] sm:$0xff]
    %v182 = vld [vmem:[#allocation5 + $0x2c8] sm:$0xff]
    %v183 = vld [vmem:[#allocation5 + $0x2d0] sm:$0xff]
    %v184 = vld [vmem:[#allocation5 + $0x2d8] sm:$0xff]
    %v185 = vld [vmem:[#allocation5 + $0x2e0] sm:$0xff]
    %v186 = vld [vmem:[#allocation5 + $0x2e8] sm:$0xff]
    %v187 = vld [vmem:[#allocation5 + $0x2f0] sm:$0xff]
    %v188 = vld [vmem:[#allocation5 + $0x2f8] sm:$0xff]
    %v189 = vld [vmem:[#allocation5 + $0x300] sm:$0xff]
    %v190 = vld [vmem:[#allocation5 + $0x308] sm:$0xff]
    %v191 = vld [vmem:[#allocation5 + $0x310] sm:$0xff]
    %v192 = vld [vmem:[#allocation5 + $0x318] sm:$0xff]
    %v193 = vld [vmem:[#allocation5 + $0x320] sm:$0xff]
    %v194 = vld [vmem:[#allocation5 + $0x328] sm:$0xff]
    %v195 = vld [vmem:[#allocation5 + $0x330] sm:$0xff]
    %v196 = vld [vmem:[#allocation5 + $0x338] sm:$0xff]
    %v197 = vld [vmem:[#allocation5 + $0x340] sm:$0xff]
    %v198 = vld [vmem:[#allocation5 + $0x348] sm:$0xff]
    %v199 = vld [vmem:[#allocation5 + $0x350] sm:$0xff]
    %v200 = vld [vmem:[#allocation5 + $0x358] sm:$0xff]
    %v201 = vld [vmem:[#allocation5 + $0x360] sm:$0xff]
    %v202 = vld [vmem:[#allocation5 + $0x368] sm:$0xff]
    %v203 = vld [vmem:[#allocation5 + $0x370] sm:$0xff]
    %v204 = vld [vmem:[#allocation5 + $0x378] sm:$0xff]
    %v205 = vld [vmem:[#allocation5 + $0x380] sm:$0xff]
    %v206 = vld [vmem:[#allocation5 + $0x388] sm:$0xff]
    %v207 = vld [vmem:[#allocation5 + $0x390] sm:$0xff]
    %v208 = vld [vmem:[#allocation5 + $0x398] sm:$0xff]
    %v209 = vld [vmem:[#allocation5 + $0x3a0] sm:$0xff]
    %v210 = vld [vmem:[#allocation5 + $0x3a8] sm:$0xff]
    %v211 = vld [vmem:[#allocation5 + $0x3b0] sm:$0xff]
    %v212 = vld [vmem:[#allocation5 + $0x3b8] sm:$0xff]
    %v213 = vld [vmem:[#allocation5 + $0x3c0] sm:$0xff]
    %v214 = vld [vmem:[#allocation5 + $0x3c8] sm:$0xff]
    %v215 = vld [vmem:[#allocation5 + $0x3d0] sm:$0xff]
    %v216 = vld [vmem:[#allocation5 + $0x3d8] sm:$0xff]
    %v217 = vld [vmem:[#allocation5 + $0x3e0] sm:$0xff]
    %v218 = vld [vmem:[#allocation5 + $0x3e8] sm:$0xff]
    %v219 = vld [vmem:[#allocation5 + $0x3f0] sm:$0xff]
    %v220 = vld [vmem:[#allocation5 + $0x3f8] sm:$0xff]
    %v222 = vlaneseq
    %v223 = vshrl.u32 %v222, 7
    %v224 = vsub.s32 0, %v223
    %v225 = vrot.slane %v92, %v224
    %v226 = vlaneseq
    %v227 = vshrl.u32 %v226, 7
    %v228 = vsub.s32 1, %v227
    %v229 = vrot.slane %v92, %v228
    %v234 = vlaneseq
    %v235 = vshrl.u32 %v234, 7
    %v236 = vsub.s32 0, %v235
    %v237 = vrot.slane %v90, %v236
    %v238 = vlaneseq
    %v239 = vshrl.u32 %v238, 7
    %v240 = vsub.s32 4, %v239
    %v241 = vrot.slane %v90, %v240
    %v242 = vlaneseq
    %v243 = vshrl.u32 %v242, 7
    %v244 = vsub.s32 0, %v243
    %v245 = vrot.slane %v91, %v244
    %v246 = vlaneseq
    %v247 = vshrl.u32 %v246, 7
    %v248 = vsub.s32 4, %v247
    %v249 = vrot.slane %v91, %v248
    %254 = vmatprep.subr.mxu0 %v94
    %255 = vmatpush1.msra.mxu0 %v93
    %256 = vmatprep.subr.mxu0 %v98
    %257 = vmatpush1.msra.mxu0 %v97
    %258 = vmatprep.subr.mxu0 %v102
    %259 = vmatpush1.msra.mxu0 %v101
    %260 = vmatprep.subr.mxu0 %v106
    %261 = vmatpush1.msra.mxu0 %v105
    %262 = vmatprep.subr.mxu0 %v110
    %263 = vmatpush1.msra.mxu0 %v109
    %264 = vmatprep.subr.mxu0 %v114
    %265 = vmatpush1.msra.mxu0 %v113
    %266 = vmatprep.subr.mxu0 %v118
    %267 = vmatpush1.msra.mxu0 %v117
    %268 = vmatprep.subr.mxu0 %v122
    %269 = vmatpush1.msra.mxu0 %v121
    %270 = vmatprep.subr.mxu0 %v126
    %271 = vmatpush1.msra.mxu0 %v125
    %272 = vmatprep.subr.mxu0 %v130
    %273 = vmatpush1.msra.mxu0 %v129
    %274 = vmatprep.subr.mxu0 %v134
    %275 = vmatpush1.msra.mxu0 %v133
    %276 = vmatprep.subr.mxu0 %v138
    %277 = vmatpush1.msra.mxu0 %v137
    %278 = vmatprep.subr.mxu0 %v142
    %279 = vmatpush1.msra.mxu0 %v141
    %280 = vmatprep.subr.mxu0 %v146
    %281 = vmatpush1.msra.mxu0 %v145
    %282 = vmatprep.subr.mxu0 %v150
    %283 = vmatpush1.msra.mxu0 %v149
    %284 = vmatprep.subr.mxu0 %v154
    %285 = vmatpush1.msra.mxu0 %v153
    %286 = vmatprep.subr.mxu0 %v158
    %287 = vmatpush1.msra.mxu0 %v157
    %288 = vmatprep.subr.mxu0 %v162
    %289 = vmatpush1.msra.mxu0 %v161
    %290 = vmatprep.subr.mxu0 %v166
    %291 = vmatpush1.msra.mxu0 %v165
    %292 = vmatprep.subr.mxu0 %v170
    %293 = vmatpush1.msra.mxu0 %v169
    %294 = vmatprep.subr.mxu0 %v174
    %295 = vmatpush1.msra.mxu0 %v173
    %296 = vmatprep.subr.mxu0 %v178
    %297 = vmatpush1.msra.mxu0 %v177
    %298 = vmatprep.subr.mxu0 %v182
    %299 = vmatpush1.msra.mxu0 %v181
    %300 = vmatprep.subr.mxu0 %v186
    %301 = vmatpush1.msra.mxu0 %v185
    %302 = vmatprep.subr.mxu0 %v190
    %303 = vmatpush1.msra.mxu0 %v189
    %304 = vmatprep.subr.mxu0 %v194
    %305 = vmatpush1.msra.mxu0 %v193
    %306 = vmatprep.subr.mxu0 %v198
    %307 = vmatpush1.msra.mxu0 %v197
    %308 = vmatprep.subr.mxu0 %v202
    %309 = vmatpush1.msra.mxu0 %v201
    %310 = vmatprep.subr.mxu0 %v206
    %311 = vmatpush1.msra.mxu0 %v205
    %312 = vmatprep.subr.mxu0 %v210
    %313 = vmatpush1.msra.mxu0 %v209
    %314 = vmatprep.subr.mxu0 %v214
    %315 = vmatpush1.msra.mxu0 %v213
    %316 = vmatprep.subr.mxu0 %v218
    %317 = vmatpush1.msra.mxu0 %v217
    %318 = vmatprep.mubr.f32.mxu0 %v229
    %319 = vmatmul.mubr.f32.gmra.mrb[0].mxu0 %v225
    %v320 = vpop.f32.mrb[0].mxu0
    %v321 = vadd.f32 %v237, %v320
    %v322 = vpop.f32.mrb[0].mxu0
    %v323 = vadd.f32 %v241, %v322
    %324 = vdwg.mxu0
    %325 = vmatprep.subr.mxu0 %v96
    %326 = vmatpush1.msra.mxu0 %v95
    %327 = vmatprep.subr.mxu0 %v100
    %328 = vmatpush1.msra.mxu0 %v99
    %329 = vmatprep.subr.mxu0 %v104
    %330 = vmatpush1.msra.mxu0 %v103
    %331 = vmatprep.subr.mxu0 %v108
    %332 = vmatpush1.msra.mxu0 %v107
    %333 = vmatprep.subr.mxu0 %v112
    %334 = vmatpush1.msra.mxu0 %v111
    %335 = vmatprep.subr.mxu0 %v116
    %336 = vmatpush1.msra.mxu0 %v115
    %337 = vmatprep.subr.mxu0 %v120
    %338 = vmatpush1.msra.mxu0 %v119
    %339 = vmatprep.subr.mxu0 %v124
    %340 = vmatpush1.msra.mxu0 %v123
    %341 = vmatprep.subr.mxu0 %v128
    %342 = vmatpush1.msra.mxu0 %v127
    %343 = vmatprep.subr.mxu0 %v132
    %344 = vmatpush1.msra.mxu0 %v131
    %345 = vmatprep.subr.mxu0 %v136
    %346 = vmatpush1.msra.mxu0 %v135
    %347 = vmatprep.subr.mxu0 %v140
    %348 = vmatpush1.msra.mxu0 %v139
    %349 = vmatprep.subr.mxu0 %v144
    %350 = vmatpush1.msra.mxu0 %v143
    %351 = vmatprep.subr.mxu0 %v148
    %352 = vmatpush1.msra.mxu0 %v147
    %353 = vmatprep.subr.mxu0 %v152
    %354 = vmatpush1.msra.mxu0 %v151
    %355 = vmatprep.subr.mxu0 %v156
    %356 = vmatpush1.msra.mxu0 %v155
    %357 = vmatprep.subr.mxu0 %v160
    %358 = vmatpush1.msra.mxu0 %v159
    %359 = vmatprep.subr.mxu0 %v164
    %360 = vmatpush1.msra.mxu0 %v163
    %361 = vmatprep.subr.mxu0 %v168
    %362 = vmatpush1.msra.mxu0 %v167
    %363 = vmatprep.subr.mxu0 %v172
    %364 = vmatpush1.msra.mxu0 %v171
    %365 = vmatprep.subr.mxu0 %v176
    %366 = vmatpush1.msra.mxu0 %v175
    %367 = vmatprep.subr.mxu0 %v180
    %368 = vmatpush1.msra.mxu0 %v179
    %369 = vmatprep.subr.mxu0 %v184
    %370 = vmatpush1.msra.mxu0 %v183
    %371 = vmatprep.subr.mxu0 %v188
    %372 = vmatpush1.msra.mxu0 %v187
    %373 = vmatprep.subr.mxu0 %v192
    %374 = vmatpush1.msra.mxu0 %v191
    %375 = vmatprep.subr.mxu0 %v196
    %376 = vmatpush1.msra.mxu0 %v195
    %377 = vmatprep.subr.mxu0 %v200
    %378 = vmatpush1.msra.mxu0 %v199
    %379 = vmatprep.subr.mxu0 %v204
    %380 = vmatpush1.msra.mxu0 %v203
    %381 = vmatprep.subr.mxu0 %v208
    %382 = vmatpush1.msra.mxu0 %v207
    %383 = vmatprep.subr.mxu0 %v212
    %384 = vmatpush1.msra.mxu0 %v211
    %385 = vmatprep.subr.mxu0 %v216
    %386 = vmatpush1.msra.mxu0 %v215
    %387 = vmatprep.subr.mxu0 %v220
    %388 = vmatpush1.msra.mxu0 %v219
    %389 = vmatprep.mubr.f32.mxu0 %v229
    %390 = vmatmul.mubr.f32.gmra.mrb[0].mxu0 %v225
    %v391 = vpop.f32.mrb[0].mxu0
    %v392 = vadd.f32 %v245, %v391
    %v393 = vpop.f32.mrb[0].mxu0
    %v394 = vadd.f32 %v249, %v393
    %395 = vdwg.mxu0
    %v396 = vmax.f32 %v321, 0.0
    %v397 = vmax.f32 %v323, 0.0
    %v398 = vmax.f32 %v392, 0.0
    %v399 = vmax.f32 %v394, 0.0
    %v400 = vld [vmem:[#allocation7] sm:$0xff]
    %v401 = vld [vmem:[#allocation7 + $0x8] sm:$0xff]
    %v402 = vld [vmem:[#allocation7 + $0x10] sm:$0xff]
    %v403 = vld [vmem:[#allocation7 + $0x18] sm:$0xff]
    %v404 = vld [vmem:[#allocation7 + $0x20] sm:$0xff]
    %v405 = vld [vmem:[#allocation7 + $0x28] sm:$0xff]
    %v406 = vld [vmem:[#allocation7 + $0x30] sm:$0xff]
    %v407 = vld [vmem:[#allocation7 + $0x38] sm:$0xff]
    %v408 = vld [vmem:[#allocation7 + $0x40] sm:$0xff]
    %v409 = vld [vmem:[#allocation7 + $0x48] sm:$0xff]
    %v410 = vld [vmem:[#allocation7 + $0x50] sm:$0xff]
    %v411 = vld [vmem:[#allocation7 + $0x58] sm:$0xff]
    %v412 = vld [vmem:[#allocation7 + $0x60] sm:$0xff]
    %v413 = vld [vmem:[#allocation7 + $0x68] sm:$0xff]
    %v414 = vld [vmem:[#allocation7 + $0x70] sm:$0xff]
    %v415 = vld [vmem:[#allocation7 + $0x78] sm:$0xff]
    %v416 = vld [vmem:[#allocation7 + $0x80] sm:$0xff]
    %v417 = vld [vmem:[#allocation7 + $0x88] sm:$0xff]
    %v418 = vld [vmem:[#allocation7 + $0x90] sm:$0xff]
    %v419 = vld [vmem:[#allocation7 + $0x98] sm:$0xff]
    %v420 = vld [vmem:[#allocation7 + $0xa0] sm:$0xff]
    %v421 = vld [vmem:[#allocation7 + $0xa8] sm:$0xff]
    %v422 = vld [vmem:[#allocation7 + $0xb0] sm:$0xff]
    %v423 = vld [vmem:[#allocation7 + $0xb8] sm:$0xff]
    %v424 = vld [vmem:[#allocation7 + $0xc0] sm:$0xff]
    %v425 = vld [vmem:[#allocation7 + $0xc8] sm:$0xff]
    %v426 = vld [vmem:[#allocation7 + $0xd0] sm:$0xff]
    %v427 = vld [vmem:[#allocation7 + $0xd8] sm:$0xff]
    %v428 = vld [vmem:[#allocation7 + $0xe0] sm:$0xff]
    %v429 = vld [vmem:[#allocation7 + $0xe8] sm:$0xff]
    %v430 = vld [vmem:[#allocation7 + $0xf0] sm:$0xff]
    %v431 = vld [vmem:[#allocation7 + $0xf8] sm:$0xff]
    %v432 = vld [vmem:[#allocation7 + $0x100] sm:$0xff]
    %v433 = vld [vmem:[#allocation7 + $0x108] sm:$0xff]
    %v434 = vld [vmem:[#allocation7 + $0x110] sm:$0xff]
    %v435 = vld [vmem:[#allocation7 + $0x118] sm:$0xff]
    %v436 = vld [vmem:[#allocation7 + $0x120] sm:$0xff]
    %v437 = vld [vmem:[#allocation7 + $0x128] sm:$0xff]
    %v438 = vld [vmem:[#allocation7 + $0x130] sm:$0xff]
    %v439 = vld [vmem:[#allocation7 + $0x138] sm:$0xff]
    %v440 = vld [vmem:[#allocation7 + $0x140] sm:$0xff]
    %v441 = vld [vmem:[#allocation7 + $0x148] sm:$0xff]
    %v442 = vld [vmem:[#allocation7 + $0x150] sm:$0xff]
    %v443 = vld [vmem:[#allocation7 + $0x158] sm:$0xff]
    %v444 = vld [vmem:[#allocation7 + $0x160] sm:$0xff]
    %v445 = vld [vmem:[#allocation7 + $0x168] sm:$0xff]
    %v446 = vld [vmem:[#allocation7 + $0x170] sm:$0xff]
    %v447 = vld [vmem:[#allocation7 + $0x178] sm:$0xff]
    %v448 = vld [vmem:[#allocation7 + $0x180] sm:$0xff]
    %v449 = vld [vmem:[#allocation7 + $0x188] sm:$0xff]
    %v450 = vld [vmem:[#allocation7 + $0x190] sm:$0xff]
    %v451 = vld [vmem:[#allocation7 + $0x198] sm:$0xff]
    %v452 = vld [vmem:[#allocation7 + $0x1a0] sm:$0xff]
    %v453 = vld [vmem:[#allocation7 + $0x1a8] sm:$0xff]
    %v454 = vld [vmem:[#allocation7 + $0x1b0] sm:$0xff]
    %v455 = vld [vmem:[#allocation7 + $0x1b8] sm:$0xff]
    %v456 = vld [vmem:[#allocation7 + $0x1c0] sm:$0xff]
    %v457 = vld [vmem:[#allocation7 + $0x1c8] sm:$0xff]
    %v458 = vld [vmem:[#allocation7 + $0x1d0] sm:$0xff]
    %v459 = vld [vmem:[#allocation7 + $0x1d8] sm:$0xff]
    %v460 = vld [vmem:[#allocation7 + $0x1e0] sm:$0xff]
    %v461 = vld [vmem:[#allocation7 + $0x1e8] sm:$0xff]
    %v462 = vld [vmem:[#allocation7 + $0x1f0] sm:$0xff]
    %v463 = vld [vmem:[#allocation7 + $0x1f8] sm:$0xff]
    %v464 = vld [vmem:[#allocation7 + $0x200] sm:$0xff]
    %v465 = vld [vmem:[#allocation7 + $0x208] sm:$0xff]
    %v466 = vld [vmem:[#allocation7 + $0x210] sm:$0xff]
    %v467 = vld [vmem:[#allocation7 + $0x218] sm:$0xff]
    %v468 = vld [vmem:[#allocation7 + $0x220] sm:$0xff]
    %v469 = vld [vmem:[#allocation7 + $0x228] sm:$0xff]
    %v470 = vld [vmem:[#allocation7 + $0x230] sm:$0xff]
    %v471 = vld [vmem:[#allocation7 + $0x238] sm:$0xff]
    %v472 = vld [vmem:[#allocation7 + $0x240] sm:$0xff]
    %v473 = vld [vmem:[#allocation7 + $0x248] sm:$0xff]
    %v474 = vld [vmem:[#allocation7 + $0x250] sm:$0xff]
    %v475 = vld [vmem:[#allocation7 + $0x258] sm:$0xff]
    %v476 = vld [vmem:[#allocation7 + $0x260] sm:$0xff]
    %v477 = vld [vmem:[#allocation7 + $0x268] sm:$0xff]
    %v478 = vld [vmem:[#allocation7 + $0x270] sm:$0xff]
    %v479 = vld [vmem:[#allocation7 + $0x278] sm:$0xff]
    %v480 = vld [vmem:[#allocation7 + $0x280] sm:$0xff]
    %v481 = vld [vmem:[#allocation7 + $0x288] sm:$0xff]
    %v482 = vld [vmem:[#allocation7 + $0x290] sm:$0xff]
    %v483 = vld [vmem:[#allocation7 + $0x298] sm:$0xff]
    %v484 = vld [vmem:[#allocation7 + $0x2a0] sm:$0xff]
    %v485 = vld [vmem:[#allocation7 + $0x2a8] sm:$0xff]
    %v486 = vld [vmem:[#allocation7 + $0x2b0] sm:$0xff]
    %v487 = vld [vmem:[#allocation7 + $0x2b8] sm:$0xff]
    %v488 = vld [vmem:[#allocation7 + $0x2c0] sm:$0xff]
    %v489 = vld [vmem:[#allocation7 + $0x2c8] sm:$0xff]
    %v490 = vld [vmem:[#allocation7 + $0x2d0] sm:$0xff]
    %v491 = vld [vmem:[#allocation7 + $0x2d8] sm:$0xff]
    %v492 = vld [vmem:[#allocation7 + $0x2e0] sm:$0xff]
    %v493 = vld [vmem:[#allocation7 + $0x2e8] sm:$0xff]
    %v494 = vld [vmem:[#allocation7 + $0x2f0] sm:$0xff]
    %v495 = vld [vmem:[#allocation7 + $0x2f8] sm:$0xff]
    %v496 = vld [vmem:[#allocation7 + $0x300] sm:$0xff]
    %v497 = vld [vmem:[#allocation7 + $0x308] sm:$0xff]
    %v498 = vld [vmem:[#allocation7 + $0x310] sm:$0xff]
    %v499 = vld [vmem:[#allocation7 + $0x318] sm:$0xff]
    %v500 = vld [vmem:[#allocation7 + $0x320] sm:$0xff]
    %v501 = vld [vmem:[#allocation7 + $0x328] sm:$0xff]
    %v502 = vld [vmem:[#allocation7 + $0x330] sm:$0xff]
    %v503 = vld [vmem:[#allocation7 + $0x338] sm:$0xff]
    %v504 = vld [vmem:[#allocation7 + $0x340] sm:$0xff]
    %v505 = vld [vmem:[#allocation7 + $0x348] sm:$0xff]
    %v506 = vld [vmem:[#allocation7 + $0x350] sm:$0xff]
    %v507 = vld [vmem:[#allocation7 + $0x358] sm:$0xff]
    %v508 = vld [vmem:[#allocation7 + $0x360] sm:$0xff]
    %v509 = vld [vmem:[#allocation7 + $0x368] sm:$0xff]
    %v510 = vld [vmem:[#allocation7 + $0x370] sm:$0xff]
    %v511 = vld [vmem:[#allocation7 + $0x378] sm:$0xff]
    %v512 = vld [vmem:[#allocation7 + $0x380] sm:$0xff]
    %v513 = vld [vmem:[#allocation7 + $0x388] sm:$0xff]
    %v514 = vld [vmem:[#allocation7 + $0x390] sm:$0xff]
    %v515 = vld [vmem:[#allocation7 + $0x398] sm:$0xff]
    %v516 = vld [vmem:[#allocation7 + $0x3a0] sm:$0xff]
    %v517 = vld [vmem:[#allocation7 + $0x3a8] sm:$0xff]
    %v518 = vld [vmem:[#allocation7 + $0x3b0] sm:$0xff]
    %v519 = vld [vmem:[#allocation7 + $0x3b8] sm:$0xff]
    %v520 = vld [vmem:[#allocation7 + $0x3c0] sm:$0xff]
    %v521 = vld [vmem:[#allocation7 + $0x3c8] sm:$0xff]
    %v522 = vld [vmem:[#allocation7 + $0x3d0] sm:$0xff]
    %v523 = vld [vmem:[#allocation7 + $0x3d8] sm:$0xff]
    %v524 = vld [vmem:[#allocation7 + $0x3e0] sm:$0xff]
    %v525 = vld [vmem:[#allocation7 + $0x3e8] sm:$0xff]
    %v526 = vld [vmem:[#allocation7 + $0x3f0] sm:$0xff]
    %v527 = vld [vmem:[#allocation7 + $0x3f8] sm:$0xff]
    %v528 = vld [vmem:[#allocation7 + $0x400] sm:$0xff]
    %v529 = vld [vmem:[#allocation7 + $0x408] sm:$0xff]
    %v530 = vld [vmem:[#allocation7 + $0x410] sm:$0xff]
    %v531 = vld [vmem:[#allocation7 + $0x418] sm:$0xff]
    %v532 = vld [vmem:[#allocation7 + $0x420] sm:$0xff]
    %v533 = vld [vmem:[#allocation7 + $0x428] sm:$0xff]
    %v534 = vld [vmem:[#allocation7 + $0x430] sm:$0xff]
    %v535 = vld [vmem:[#allocation7 + $0x438] sm:$0xff]
    %v536 = vld [vmem:[#allocation7 + $0x440] sm:$0xff]
    %v537 = vld [vmem:[#allocation7 + $0x448] sm:$0xff]
    %v538 = vld [vmem:[#allocation7 + $0x450] sm:$0xff]
    %v539 = vld [vmem:[#allocation7 + $0x458] sm:$0xff]
    %v540 = vld [vmem:[#allocation7 + $0x460] sm:$0xff]
    %v541 = vld [vmem:[#allocation7 + $0x468] sm:$0xff]
    %v542 = vld [vmem:[#allocation7 + $0x470] sm:$0xff]
    %v543 = vld [vmem:[#allocation7 + $0x478] sm:$0xff]
    %v544 = vld [vmem:[#allocation7 + $0x480] sm:$0xff]
    %v545 = vld [vmem:[#allocation7 + $0x488] sm:$0xff]
    %v546 = vld [vmem:[#allocation7 + $0x490] sm:$0xff]
    %v547 = vld [vmem:[#allocation7 + $0x498] sm:$0xff]
    %v548 = vld [vmem:[#allocation7 + $0x4a0] sm:$0xff]
    %v549 = vld [vmem:[#allocation7 + $0x4a8] sm:$0xff]
    %v550 = vld [vmem:[#allocation7 + $0x4b0] sm:$0xff]
    %v551 = vld [vmem:[#allocation7 + $0x4b8] sm:$0xff]
    %v552 = vld [vmem:[#allocation7 + $0x4c0] sm:$0xff]
    %v553 = vld [vmem:[#allocation7 + $0x4c8] sm:$0xff]
    %v554 = vld [vmem:[#allocation7 + $0x4d0] sm:$0xff]
    %v555 = vld [vmem:[#allocation7 + $0x4d8] sm:$0xff]
    %v556 = vld [vmem:[#allocation7 + $0x4e0] sm:$0xff]
    %v557 = vld [vmem:[#allocation7 + $0x4e8] sm:$0xff]
    %v558 = vld [vmem:[#allocation7 + $0x4f0] sm:$0xff]
    %v559 = vld [vmem:[#allocation7 + $0x4f8] sm:$0xff]
    %v560 = vld [vmem:[#allocation7 + $0x500] sm:$0xff]
    %v561 = vld [vmem:[#allocation7 + $0x508] sm:$0xff]
    %v562 = vld [vmem:[#allocation7 + $0x510] sm:$0xff]
    %v563 = vld [vmem:[#allocation7 + $0x518] sm:$0xff]
    %v564 = vld [vmem:[#allocation7 + $0x520] sm:$0xff]
    %v565 = vld [vmem:[#allocation7 + $0x528] sm:$0xff]
    %v566 = vld [vmem:[#allocation7 + $0x530] sm:$0xff]
    %v567 = vld [vmem:[#allocation7 + $0x538] sm:$0xff]
    %v568 = vld [vmem:[#allocation7 + $0x540] sm:$0xff]
    %v569 = vld [vmem:[#allocation7 + $0x548] sm:$0xff]
    %v570 = vld [vmem:[#allocation7 + $0x550] sm:$0xff]
    %v571 = vld [vmem:[#allocation7 + $0x558] sm:$0xff]
    %v572 = vld [vmem:[#allocation7 + $0x560] sm:$0xff]
    %v573 = vld [vmem:[#allocation7 + $0x568] sm:$0xff]
    %v574 = vld [vmem:[#allocation7 + $0x570] sm:$0xff]
    %v575 = vld [vmem:[#allocation7 + $0x578] sm:$0xff]
    %v576 = vld [vmem:[#allocation7 + $0x580] sm:$0xff]
    %v577 = vld [vmem:[#allocation7 + $0x588] sm:$0xff]
    %v578 = vld [vmem:[#allocation7 + $0x590] sm:$0xff]
    %v579 = vld [vmem:[#allocation7 + $0x598] sm:$0xff]
    %v580 = vld [vmem:[#allocation7 + $0x5a0] sm:$0xff]
    %v581 = vld [vmem:[#allocation7 + $0x5a8] sm:$0xff]
    %v582 = vld [vmem:[#allocation7 + $0x5b0] sm:$0xff]
    %v583 = vld [vmem:[#allocation7 + $0x5b8] sm:$0xff]
    %v584 = vld [vmem:[#allocation7 + $0x5c0] sm:$0xff]
    %v585 = vld [vmem:[#allocation7 + $0x5c8] sm:$0xff]
    %v586 = vld [vmem:[#allocation7 + $0x5d0] sm:$0xff]
    %v587 = vld [vmem:[#allocation7 + $0x5d8] sm:$0xff]
    %v588 = vld [vmem:[#allocation7 + $0x5e0] sm:$0xff]
    %v589 = vld [vmem:[#allocation7 + $0x5e8] sm:$0xff]
    %v590 = vld [vmem:[#allocation7 + $0x5f0] sm:$0xff]
    %v591 = vld [vmem:[#allocation7 + $0x5f8] sm:$0xff]
    %v592 = vld [vmem:[#allocation7 + $0x600] sm:$0xff]
    %v593 = vld [vmem:[#allocation7 + $0x608] sm:$0xff]
    %v594 = vld [vmem:[#allocation7 + $0x610] sm:$0xff]
    %v595 = vld [vmem:[#allocation7 + $0x618] sm:$0xff]
    %v596 = vld [vmem:[#allocation7 + $0x620] sm:$0xff]
    %v597 = vld [vmem:[#allocation7 + $0x628] sm:$0xff]
    %v598 = vld [vmem:[#allocation7 + $0x630] sm:$0xff]
    %v599 = vld [vmem:[#allocation7 + $0x638] sm:$0xff]
    %v600 = vld [vmem:[#allocation7 + $0x640] sm:$0xff]
    %v601 = vld [vmem:[#allocation7 + $0x648] sm:$0xff]
    %v602 = vld [vmem:[#allocation7 + $0x650] sm:$0xff]
    %v603 = vld [vmem:[#allocation7 + $0x658] sm:$0xff]
    %v604 = vld [vmem:[#allocation7 + $0x660] sm:$0xff]
    %v605 = vld [vmem:[#allocation7 + $0x668] sm:$0xff]
    %v606 = vld [vmem:[#allocation7 + $0x670] sm:$0xff]
    %v607 = vld [vmem:[#allocation7 + $0x678] sm:$0xff]
    %v608 = vld [vmem:[#allocation7 + $0x680] sm:$0xff]
    %v609 = vld [vmem:[#allocation7 + $0x688] sm:$0xff]
    %v610 = vld [vmem:[#allocation7 + $0x690] sm:$0xff]
    %v611 = vld [vmem:[#allocation7 + $0x698] sm:$0xff]
    %v612 = vld [vmem:[#allocation7 + $0x6a0] sm:$0xff]
    %v613 = vld [vmem:[#allocation7 + $0x6a8] sm:$0xff]
    %v614 = vld [vmem:[#allocation7 + $0x6b0] sm:$0xff]
    %v615 = vld [vmem:[#allocation7 + $0x6b8] sm:$0xff]
    %v616 = vld [vmem:[#allocation7 + $0x6c0] sm:$0xff]
    %v617 = vld [vmem:[#allocation7 + $0x6c8] sm:$0xff]
    %v618 = vld [vmem:[#allocation7 + $0x6d0] sm:$0xff]
    %v619 = vld [vmem:[#allocation7 + $0x6d8] sm:$0xff]
    %v620 = vld [vmem:[#allocation7 + $0x6e0] sm:$0xff]
    %v621 = vld [vmem:[#allocation7 + $0x6e8] sm:$0xff]
    %v622 = vld [vmem:[#allocation7 + $0x6f0] sm:$0xff]
    %v623 = vld [vmem:[#allocation7 + $0x6f8] sm:$0xff]
    %v624 = vld [vmem:[#allocation7 + $0x700] sm:$0xff]
    %v625 = vld [vmem:[#allocation7 + $0x708] sm:$0xff]
    %v626 = vld [vmem:[#allocation7 + $0x710] sm:$0xff]
    %v627 = vld [vmem:[#allocation7 + $0x718] sm:$0xff]
    %v628 = vld [vmem:[#allocation7 + $0x720] sm:$0xff]
    %v629 = vld [vmem:[#allocation7 + $0x728] sm:$0xff]
    %v630 = vld [vmem:[#allocation7 + $0x730] sm:$0xff]
    %v631 = vld [vmem:[#allocation7 + $0x738] sm:$0xff]
    %v632 = vld [vmem:[#allocation7 + $0x740] sm:$0xff]
    %v633 = vld [vmem:[#allocation7 + $0x748] sm:$0xff]
    %v634 = vld [vmem:[#allocation7 + $0x750] sm:$0xff]
    %v635 = vld [vmem:[#allocation7 + $0x758] sm:$0xff]
    %v636 = vld [vmem:[#allocation7 + $0x760] sm:$0xff]
    %v637 = vld [vmem:[#allocation7 + $0x768] sm:$0xff]
    %v638 = vld [vmem:[#allocation7 + $0x770] sm:$0xff]
    %v639 = vld [vmem:[#allocation7 + $0x778] sm:$0xff]
    %v640 = vld [vmem:[#allocation7 + $0x780] sm:$0xff]
    %v641 = vld [vmem:[#allocation7 + $0x788] sm:$0xff]
    %v642 = vld [vmem:[#allocation7 + $0x790] sm:$0xff]
    %v643 = vld [vmem:[#allocation7 + $0x798] sm:$0xff]
    %v644 = vld [vmem:[#allocation7 + $0x7a0] sm:$0xff]
    %v645 = vld [vmem:[#allocation7 + $0x7a8] sm:$0xff]
    %v646 = vld [vmem:[#allocation7 + $0x7b0] sm:$0xff]
    %v647 = vld [vmem:[#allocation7 + $0x7b8] sm:$0xff]
    %v648 = vld [vmem:[#allocation7 + $0x7c0] sm:$0xff]
    %v649 = vld [vmem:[#allocation7 + $0x7c8] sm:$0xff]
    %v650 = vld [vmem:[#allocation7 + $0x7d0] sm:$0xff]
    %v651 = vld [vmem:[#allocation7 + $0x7d8] sm:$0xff]
    %v652 = vld [vmem:[#allocation7 + $0x7e0] sm:$0xff]
    %v653 = vld [vmem:[#allocation7 + $0x7e8] sm:$0xff]
    %v654 = vld [vmem:[#allocation7 + $0x7f0] sm:$0xff]
    %v655 = vld [vmem:[#allocation7 + $0x7f8] sm:$0xff]
    %v656 = vlaneseq
    %v657 = vshrl.u32 %v656, 7
    %v658 = vsub.s32 1, %v657
    %v659 = vrot.slane %v90, %v658
    %v660 = vlaneseq
    %v661 = vshrl.u32 %v660, 7
    %v662 = vsub.s32 5, %v661
    %v663 = vrot.slane %v90, %v662
    %v664 = vlaneseq
    %v665 = vshrl.u32 %v664, 7
    %v666 = vsub.s32 1, %v665
    %v667 = vrot.slane %v91, %v666
    %v668 = vlaneseq
    %v669 = vshrl.u32 %v668, 7
    %v670 = vsub.s32 5, %v669
    %v671 = vrot.slane %v91, %v670
    %676 = vmatprep.subr.mxu0 %v401
    %677 = vmatpush1.msra.mxu0 %v400
    %678 = vmatprep.subr.mxu0 %v405
    %679 = vmatpush1.msra.mxu0 %v404
    %680 = vmatprep.subr.mxu0 %v409
    %681 = vmatpush1.msra.mxu0 %v408
    %682 = vmatprep.subr.mxu0 %v413
    %683 = vmatpush1.msra.mxu0 %v412
    %684 = vmatprep.subr.mxu0 %v417
    %685 = vmatpush1.msra.mxu0 %v416
    %686 = vmatprep.subr.mxu0 %v421
    %687 = vmatpush1.msra.mxu0 %v420
    %688 = vmatprep.subr.mxu0 %v425
    %689 = vmatpush1.msra.mxu0 %v424
    %690 = vmatprep.subr.mxu0 %v429
    %691 = vmatpush1.msra.mxu0 %v428
    %692 = vmatprep.subr.mxu0 %v433
    %693 = vmatpush1.msra.mxu0 %v432
    %694 = vmatprep.subr.mxu0 %v437
    %695 = vmatpush1.msra.mxu0 %v436
    %696 = vmatprep.subr.mxu0 %v441
    %697 = vmatpush1.msra.mxu0 %v440
    %698 = vmatprep.subr.mxu0 %v445
    %699 = vmatpush1.msra.mxu0 %v444
    %700 = vmatprep.subr.mxu0 %v449
    %701 = vmatpush1.msra.mxu0 %v448
    %702 = vmatprep.subr.mxu0 %v453
    %703 = vmatpush1.msra.mxu0 %v452
    %704 = vmatprep.subr.mxu0 %v457
    %705 = vmatpush1.msra.mxu0 %v456
    %706 = vmatprep.subr.mxu0 %v461
    %707 = vmatpush1.msra.mxu0 %v460
    %708 = vmatprep.subr.mxu0 %v465
    %709 = vmatpush1.msra.mxu0 %v464
    %710 = vmatprep.subr.mxu0 %v469
    %711 = vmatpush1.msra.mxu0 %v468
    %712 = vmatprep.subr.mxu0 %v473
    %713 = vmatpush1.msra.mxu0 %v472
    %714 = vmatprep.subr.mxu0 %v477
    %715 = vmatpush1.msra.mxu0 %v476
    %716 = vmatprep.subr.mxu0 %v481
    %717 = vmatpush1.msra.mxu0 %v480
    %718 = vmatprep.subr.mxu0 %v485
    %719 = vmatpush1.msra.mxu0 %v484
    %720 = vmatprep.subr.mxu0 %v489
    %721 = vmatpush1.msra.mxu0 %v488
    %722 = vmatprep.subr.mxu0 %v493
    %723 = vmatpush1.msra.mxu0 %v492
    %724 = vmatprep.subr.mxu0 %v497
    %725 = vmatpush1.msra.mxu0 %v496
    %726 = vmatprep.subr.mxu0 %v501
    %727 = vmatpush1.msra.mxu0 %v500
    %728 = vmatprep.subr.mxu0 %v505
    %729 = vmatpush1.msra.mxu0 %v504
    %730 = vmatprep.subr.mxu0 %v509
    %731 = vmatpush1.msra.mxu0 %v508
    %732 = vmatprep.subr.mxu0 %v513
    %733 = vmatpush1.msra.mxu0 %v512
    %734 = vmatprep.subr.mxu0 %v517
    %735 = vmatpush1.msra.mxu0 %v516
    %736 = vmatprep.subr.mxu0 %v521
    %737 = vmatpush1.msra.mxu0 %v520
    %738 = vmatprep.subr.mxu0 %v525
    %739 = vmatpush1.msra.mxu0 %v524
    %740 = vmatprep.mubr.f32.mxu0 %v397
    %741 = vmatmul.mubr.f32.gmra.mrb[0].mxu0 %v396
    %v742 = vpop.f32.mrb[0].mxu0
    %v743 = vadd.f32 %v659, %v742
    %v744 = vpop.f32.mrb[0].mxu0
    %v745 = vadd.f32 %v663, %v744
    %746 = vdwg.mxu0
    %747 = vmatprep.subr.mxu0 %v529
    %748 = vmatpush1.msra.mxu0 %v528
    %749 = vmatprep.subr.mxu0 %v533
    %750 = vmatpush1.msra.mxu0 %v532
    %751 = vmatprep.subr.mxu0 %v537
    %752 = vmatpush1.msra.mxu0 %v536
    %753 = vmatprep.subr.mxu0 %v541
    %754 = vmatpush1.msra.mxu0 %v540
    %755 = vmatprep.subr.mxu0 %v545
    %756 = vmatpush1.msra.mxu0 %v544
    %757 = vmatprep.subr.mxu0 %v549
    %758 = vmatpush1.msra.mxu0 %v548
    %759 = vmatprep.subr.mxu0 %v553
    %760 = vmatpush1.msra.mxu0 %v552
    %761 = vmatprep.subr.mxu0 %v557
    %762 = vmatpush1.msra.mxu0 %v556
    %763 = vmatprep.subr.mxu0 %v561
    %764 = vmatpush1.msra.mxu0 %v560
    %765 = vmatprep.subr.mxu0 %v565
    %766 = vmatpush1.msra.mxu0 %v564
    %767 = vmatprep.subr.mxu0 %v569
    %768 = vmatpush1.msra.mxu0 %v568
    %769 = vmatprep.subr.mxu0 %v573
    %770 = vmatpush1.msra.mxu0 %v572
    %771 = vmatprep.subr.mxu0 %v577
    %772 = vmatpush1.msra.mxu0 %v576
    %773 = vmatprep.subr.mxu0 %v581
    %774 = vmatpush1.msra.mxu0 %v580
    %775 = vmatprep.subr.mxu0 %v585
    %776 = vmatpush1.msra.mxu0 %v584
    %777 = vmatprep.subr.mxu0 %v589
    %778 = vmatpush1.msra.mxu0 %v588
    %779 = vmatprep.subr.mxu0 %v593
    %780 = vmatpush1.msra.mxu0 %v592
    %781 = vmatprep.subr.mxu0 %v597
    %782 = vmatpush1.msra.mxu0 %v596
    %783 = vmatprep.subr.mxu0 %v601
    %784 = vmatpush1.msra.mxu0 %v600
    %785 = vmatprep.subr.mxu0 %v605
    %786 = vmatpush1.msra.mxu0 %v604
    %787 = vmatprep.subr.mxu0 %v609
    %788 = vmatpush1.msra.mxu0 %v608
    %789 = vmatprep.subr.mxu0 %v613
    %790 = vmatpush1.msra.mxu0 %v612
    %791 = vmatprep.subr.mxu0 %v617
    %792 = vmatpush1.msra.mxu0 %v616
    %793 = vmatprep.subr.mxu0 %v621
    %794 = vmatpush1.msra.mxu0 %v620
    %795 = vmatprep.subr.mxu0 %v625
    %796 = vmatpush1.msra.mxu0 %v624
    %797 = vmatprep.subr.mxu0 %v629
    %798 = vmatpush1.msra.mxu0 %v628
    %799 = vmatprep.subr.mxu0 %v633
    %800 = vmatpush1.msra.mxu0 %v632
    %801 = vmatprep.subr.mxu0 %v637
    %802 = vmatpush1.msra.mxu0 %v636
    %803 = vmatprep.subr.mxu0 %v641
    %804 = vmatpush1.msra.mxu0 %v640
    %805 = vmatprep.subr.mxu0 %v645
    %806 = vmatpush1.msra.mxu0 %v644
    %807 = vmatprep.subr.mxu0 %v649
    %808 = vmatpush1.msra.mxu0 %v648
    %809 = vmatprep.subr.mxu0 %v653
    %810 = vmatpush1.msra.mxu0 %v652
    %811 = vmatprep.mubr.f32.mxu0 %v399
    %812 = vmatmul.mubr.f32.gmra.mrb[0].mxu0 %v398
    %v813 = vpop.f32.mrb[0].mxu0
    %v814 = vadd.f32 %v743, %v813
    %v815 = vpop.f32.mrb[0].mxu0
    %v816 = vadd.f32 %v745, %v815
    %817 = vdwg.mxu0
    %818 = vmatprep.subr.mxu0 %v403
    %819 = vmatpush1.msra.mxu0 %v402
    %820 = vmatprep.subr.mxu0 %v407
    %821 = vmatpush1.msra.mxu0 %v406
    %822 = vmatprep.subr.mxu0 %v411
    %823 = vmatpush1.msra.mxu0 %v410
    %824 = vmatprep.subr.mxu0 %v415
    %825 = vmatpush1.msra.mxu0 %v414
    %826 = vmatprep.subr.mxu0 %v419
    %827 = vmatpush1.msra.mxu0 %v418
    %828 = vmatprep.subr.mxu0 %v423
    %829 = vmatpush1.msra.mxu0 %v422
    %830 = vmatprep.subr.mxu0 %v427
    %831 = vmatpush1.msra.mxu0 %v426
    %832 = vmatprep.subr.mxu0 %v431
    %833 = vmatpush1.msra.mxu0 %v430
    %834 = vmatprep.subr.mxu0 %v435
    %835 = vmatpush1.msra.mxu0 %v434
    %836 = vmatprep.subr.mxu0 %v439
    %837 = vmatpush1.msra.mxu0 %v438
    %838 = vmatprep.subr.mxu0 %v443
    %839 = vmatpush1.msra.mxu0 %v442
    %840 = vmatprep.subr.mxu0 %v447
    %841 = vmatpush1.msra.mxu0 %v446
    %842 = vmatprep.subr.mxu0 %v451
    %843 = vmatpush1.msra.mxu0 %v450
    %844 = vmatprep.subr.mxu0 %v455
    %845 = vmatpush1.msra.mxu0 %v454
    %846 = vmatprep.subr.mxu0 %v459
    %847 = vmatpush1.msra.mxu0 %v458
    %848 = vmatprep.subr.mxu0 %v463
    %849 = vmatpush1.msra.mxu0 %v462
    %850 = vmatprep.subr.mxu0 %v467
    %851 = vmatpush1.msra.mxu0 %v466
    %852 = vmatprep.subr.mxu0 %v471
    %853 = vmatpush1.msra.mxu0 %v470
    %854 = vmatprep.subr.mxu0 %v475
    %855 = vmatpush1.msra.mxu0 %v474
    %856 = vmatprep.subr.mxu0 %v479
    %857 = vmatpush1.msra.mxu0 %v478
    %858 = vmatprep.subr.mxu0 %v483
    %859 = vmatpush1.msra.mxu0 %v482
    %860 = vmatprep.subr.mxu0 %v487
    %861 = vmatpush1.msra.mxu0 %v486
    %862 = vmatprep.subr.mxu0 %v491
    %863 = vmatpush1.msra.mxu0 %v490
    %864 = vmatprep.subr.mxu0 %v495
    %865 = vmatpush1.msra.mxu0 %v494
    %866 = vmatprep.subr.mxu0 %v499
    %867 = vmatpush1.msra.mxu0 %v498
    %868 = vmatprep.subr.mxu0 %v503
    %869 = vmatpush1.msra.mxu0 %v502
    %870 = vmatprep.subr.mxu0 %v507
    %871 = vmatpush1.msra.mxu0 %v506
    %872 = vmatprep.subr.mxu0 %v511
    %873 = vmatpush1.msra.mxu0 %v510
    %874 = vmatprep.subr.mxu0 %v515
    %875 = vmatpush1.msra.mxu0 %v514
    %876 = vmatprep.subr.mxu0 %v519
    %877 = vmatpush1.msra.mxu0 %v518
    %878 = vmatprep.subr.mxu0 %v523
    %879 = vmatpush1.msra.mxu0 %v522
    %880 = vmatprep.subr.mxu0 %v527
    %881 = vmatpush1.msra.mxu0 %v526
    %882 = vmatprep.mubr.f32.mxu0 %v397
    %883 = vmatmul.mubr.f32.gmra.mrb[0].mxu0 %v396
    %v884 = vpop.f32.mrb[0].mxu0
    %v885 = vadd.f32 %v667, %v884
    %v886 = vpop.f32.mrb[0].mxu0
    %v887 = vadd.f32 %v671, %v886
    %888 = vdwg.mxu0
    %889 = vmatprep.subr.mxu0 %v531
    %890 = vmatpush1.msra.mxu0 %v530
    %891 = vmatprep.subr.mxu0 %v535
    %892 = vmatpush1.msra.mxu0 %v534
    %893 = vmatprep.subr.mxu0 %v539
    %894 = vmatpush1.msra.mxu0 %v538
    %895 = vmatprep.subr.mxu0 %v543
    %896 = vmatpush1.msra.mxu0 %v542
    %897 = vmatprep.subr.mxu0 %v547
    %898 = vmatpush1.msra.mxu0 %v546
    %899 = vmatprep.subr.mxu0 %v551
    %900 = vmatpush1.msra.mxu0 %v550
    %901 = vmatprep.subr.mxu0 %v555
    %902 = vmatpush1.msra.mxu0 %v554
    %903 = vmatprep.subr.mxu0 %v559
    %904 = vmatpush1.msra.mxu0 %v558
    %905 = vmatprep.subr.mxu0 %v563
    %906 = vmatpush1.msra.mxu0 %v562
    %907 = vmatprep.subr.mxu0 %v567
    %908 = vmatpush1.msra.mxu0 %v566
    %909 = vmatprep.subr.mxu0 %v571
    %910 = vmatpush1.msra.mxu0 %v570
    %911 = vmatprep.subr.mxu0 %v575
    %912 = vmatpush1.msra.mxu0 %v574
    %913 = vmatprep.subr.mxu0 %v579
    %914 = vmatpush1.msra.mxu0 %v578
    %915 = vmatprep.subr.mxu0 %v583
    %916 = vmatpush1.msra.mxu0 %v582
    %917 = vmatprep.subr.mxu0 %v587
    %918 = vmatpush1.msra.mxu0 %v586
    %919 = vmatprep.subr.mxu0 %v591
    %920 = vmatpush1.msra.mxu0 %v590
    %921 = vmatprep.subr.mxu0 %v595
    %922 = vmatpush1.msra.mxu0 %v594
    %923 = vmatprep.subr.mxu0 %v599
    %924 = vmatpush1.msra.mxu0 %v598
    %925 = vmatprep.subr.mxu0 %v603
    %926 = vmatpush1.msra.mxu0 %v602
    %927 = vmatprep.subr.mxu0 %v607
    %928 = vmatpush1.msra.mxu0 %v606
    %929 = vmatprep.subr.mxu0 %v611
    %930 = vmatpush1.msra.mxu0 %v610
    %931 = vmatprep.subr.mxu0 %v615
    %932 = vmatpush1.msra.mxu0 %v614
    %933 = vmatprep.subr.mxu0 %v619
    %934 = vmatpush1.msra.mxu0 %v618
    %935 = vmatprep.subr.mxu0 %v623
    %936 = vmatpush1.msra.mxu0 %v622
    %937 = vmatprep.subr.mxu0 %v627
    %938 = vmatpush1.msra.mxu0 %v626
    %939 = vmatprep.subr.mxu0 %v631
    %940 = vmatpush1.msra.mxu0 %v630
    %941 = vmatprep.subr.mxu0 %v635
    %942 = vmatpush1.msra.mxu0 %v634
    %943 = vmatprep.subr.mxu0 %v639
    %944 = vmatpush1.msra.mxu0 %v638
    %945 = vmatprep.subr.mxu0 %v643
    %946 = vmatpush1.msra.mxu0 %v642
    %947 = vmatprep.subr.mxu0 %v647
    %948 = vmatpush1.msra.mxu0 %v646
    %949 = vmatprep.subr.mxu0 %v651
    %950 = vmatpush1.msra.mxu0 %v650
    %951 = vmatprep.subr.mxu0 %v655
    %952 = vmatpush1.msra.mxu0 %v654
    %953 = vmatprep.mubr.f32.mxu0 %v399
    %954 = vmatmul.mubr.f32.gmra.mrb[0].mxu0 %v398
    %v955 = vpop.f32.mrb[0].mxu0
    %v956 = vadd.f32 %v885, %v955
    %v957 = vpop.f32.mrb[0].mxu0
    %v958 = vadd.f32 %v887, %v957
    %959 = vdwg.mxu0
    %v960 = vmax.f32 %v814, 0.0
    %v961 = vmax.f32 %v816, 0.0
    %v962 = vmax.f32 %v956, 0.0
    %v963 = vmax.f32 %v958, 0.0
    %v964 = vld [vmem:[#allocation8] sm:$0xff]
    %v965 = vld [vmem:[#allocation8 + $0x8] sm:$0xff]
    %v966 = vld [vmem:[#allocation8 + $0x10] sm:$0xff]
    %v967 = vld [vmem:[#allocation8 + $0x18] sm:$0xff]
    %v968 = vld [vmem:[#allocation8 + $0x20] sm:$0xff]
    %v969 = vld [vmem:[#allocation8 + $0x28] sm:$0xff]
    %v970 = vld [vmem:[#allocation8 + $0x30] sm:$0xff]
    %v971 = vld [vmem:[#allocation8 + $0x38] sm:$0xff]
    %v972 = vld [vmem:[#allocation8 + $0x40] sm:$0xff]
    %v973 = vld [vmem:[#allocation8 + $0x48] sm:$0xff]
    %v974 = vld [vmem:[#allocation8 + $0x50] sm:$0xff]
    %v975 = vld [vmem:[#allocation8 + $0x58] sm:$0xff]
    %v976 = vld [vmem:[#allocation8 + $0x60] sm:$0xff]
    %v977 = vld [vmem:[#allocation8 + $0x68] sm:$0xff]
    %v978 = vld [vmem:[#allocation8 + $0x70] sm:$0xff]
    %v979 = vld [vmem:[#allocation8 + $0x78] sm:$0xff]
    %v980 = vld [vmem:[#allocation8 + $0x80] sm:$0xff]
    %v981 = vld [vmem:[#allocation8 + $0x88] sm:$0xff]
    %v982 = vld [vmem:[#allocation8 + $0x90] sm:$0xff]
    %v983 = vld [vmem:[#allocation8 + $0x98] sm:$0xff]
    %v984 = vld [vmem:[#allocation8 + $0xa0] sm:$0xff]
    %v985 = vld [vmem:[#allocation8 + $0xa8] sm:$0xff]
    %v986 = vld [vmem:[#allocation8 + $0xb0] sm:$0xff]
    %v987 = vld [vmem:[#allocation8 + $0xb8] sm:$0xff]
    %v988 = vld [vmem:[#allocation8 + $0xc0] sm:$0xff]
    %v989 = vld [vmem:[#allocation8 + $0xc8] sm:$0xff]
    %v990 = vld [vmem:[#allocation8 + $0xd0] sm:$0xff]
    %v991 = vld [vmem:[#allocation8 + $0xd8] sm:$0xff]
    %v992 = vld [vmem:[#allocation8 + $0xe0] sm:$0xff]
    %v993 = vld [vmem:[#allocation8 + $0xe8] sm:$0xff]
    %v994 = vld [vmem:[#allocation8 + $0xf0] sm:$0xff]
    %v995 = vld [vmem:[#allocation8 + $0xf8] sm:$0xff]
    %v996 = vld [vmem:[#allocation8 + $0x100] sm:$0xff]
    %v997 = vld [vmem:[#allocation8 + $0x108] sm:$0xff]
    %v998 = vld [vmem:[#allocation8 + $0x110] sm:$0xff]
    %v999 = vld [vmem:[#allocation8 + $0x118] sm:$0xff]
    %v1000 = vld [vmem:[#allocation8 + $0x120] sm:$0xff]
    %v1001 = vld [vmem:[#allocation8 + $0x128] sm:$0xff]
    %v1002 = vld [vmem:[#allocation8 + $0x130] sm:$0xff]
    %v1003 = vld [vmem:[#allocation8 + $0x138] sm:$0xff]
    %v1004 = vld [vmem:[#allocation8 + $0x140] sm:$0xff]
    %v1005 = vld [vmem:[#allocation8 + $0x148] sm:$0xff]
    %v1006 = vld [vmem:[#allocation8 + $0x150] sm:$0xff]
    %v1007 = vld [vmem:[#allocation8 + $0x158] sm:$0xff]
    %v1008 = vld [vmem:[#allocation8 + $0x160] sm:$0xff]
    %v1009 = vld [vmem:[#allocation8 + $0x168] sm:$0xff]
    %v1010 = vld [vmem:[#allocation8 + $0x170] sm:$0xff]
    %v1011 = vld [vmem:[#allocation8 + $0x178] sm:$0xff]
    %v1012 = vld [vmem:[#allocation8 + $0x180] sm:$0xff]
    %v1013 = vld [vmem:[#allocation8 + $0x188] sm:$0xff]
    %v1014 = vld [vmem:[#allocation8 + $0x190] sm:$0xff]
    %v1015 = vld [vmem:[#allocation8 + $0x198] sm:$0xff]
    %v1016 = vld [vmem:[#allocation8 + $0x1a0] sm:$0xff]
    %v1017 = vld [vmem:[#allocation8 + $0x1a8] sm:$0xff]
    %v1018 = vld [vmem:[#allocation8 + $0x1b0] sm:$0xff]
    %v1019 = vld [vmem:[#allocation8 + $0x1b8] sm:$0xff]
    %v1020 = vld [vmem:[#allocation8 + $0x1c0] sm:$0xff]
    %v1021 = vld [vmem:[#allocation8 + $0x1c8] sm:$0xff]
    %v1022 = vld [vmem:[#allocation8 + $0x1d0] sm:$0xff]
    %v1023 = vld [vmem:[#allocation8 + $0x1d8] sm:$0xff]
    %v1024 = vld [vmem:[#allocation8 + $0x1e0] sm:$0xff]
    %v1025 = vld [vmem:[#allocation8 + $0x1e8] sm:$0xff]
    %v1026 = vld [vmem:[#allocation8 + $0x1f0] sm:$0xff]
    %v1027 = vld [vmem:[#allocation8 + $0x1f8] sm:$0xff]
    %v1028 = vld [vmem:[#allocation8 + $0x200] sm:$0xff]
    %v1029 = vld [vmem:[#allocation8 + $0x208] sm:$0xff]
    %v1030 = vld [vmem:[#allocation8 + $0x210] sm:$0xff]
    %v1031 = vld [vmem:[#allocation8 + $0x218] sm:$0xff]
    %v1032 = vld [vmem:[#allocation8 + $0x220] sm:$0xff]
    %v1033 = vld [vmem:[#allocation8 + $0x228] sm:$0xff]
    %v1034 = vld [vmem:[#allocation8 + $0x230] sm:$0xff]
    %v1035 = vld [vmem:[#allocation8 + $0x238] sm:$0xff]
    %v1036 = vld [vmem:[#allocation8 + $0x240] sm:$0xff]
    %v1037 = vld [vmem:[#allocation8 + $0x248] sm:$0xff]
    %v1038 = vld [vmem:[#allocation8 + $0x250] sm:$0xff]
    %v1039 = vld [vmem:[#allocation8 + $0x258] sm:$0xff]
    %v1040 = vld [vmem:[#allocation8 + $0x260] sm:$0xff]
    %v1041 = vld [vmem:[#allocation8 + $0x268] sm:$0xff]
    %v1042 = vld [vmem:[#allocation8 + $0x270] sm:$0xff]
    %v1043 = vld [vmem:[#allocation8 + $0x278] sm:$0xff]
    %v1044 = vld [vmem:[#allocation8 + $0x280] sm:$0xff]
    %v1045 = vld [vmem:[#allocation8 + $0x288] sm:$0xff]
    %v1046 = vld [vmem:[#allocation8 + $0x290] sm:$0xff]
    %v1047 = vld [vmem:[#allocation8 + $0x298] sm:$0xff]
    %v1048 = vld [vmem:[#allocation8 + $0x2a0] sm:$0xff]
    %v1049 = vld [vmem:[#allocation8 + $0x2a8] sm:$0xff]
    %v1050 = vld [vmem:[#allocation8 + $0x2b0] sm:$0xff]
    %v1051 = vld [vmem:[#allocation8 + $0x2b8] sm:$0xff]
    %v1052 = vld [vmem:[#allocation8 + $0x2c0] sm:$0xff]
    %v1053 = vld [vmem:[#allocation8 + $0x2c8] sm:$0xff]
    %v1054 = vld [vmem:[#allocation8 + $0x2d0] sm:$0xff]
    %v1055 = vld [vmem:[#allocation8 + $0x2d8] sm:$0xff]
    %v1056 = vld [vmem:[#allocation8 + $0x2e0] sm:$0xff]
    %v1057 = vld [vmem:[#allocation8 + $0x2e8] sm:$0xff]
    %v1058 = vld [vmem:[#allocation8 + $0x2f0] sm:$0xff]
    %v1059 = vld [vmem:[#allocation8 + $0x2f8] sm:$0xff]
    %v1060 = vld [vmem:[#allocation8 + $0x300] sm:$0xff]
    %v1061 = vld [vmem:[#allocation8 + $0x308] sm:$0xff]
    %v1062 = vld [vmem:[#allocation8 + $0x310] sm:$0xff]
    %v1063 = vld [vmem:[#allocation8 + $0x318] sm:$0xff]
    %v1064 = vld [vmem:[#allocation8 + $0x320] sm:$0xff]
    %v1065 = vld [vmem:[#allocation8 + $0x328] sm:$0xff]
    %v1066 = vld [vmem:[#allocation8 + $0x330] sm:$0xff]
    %v1067 = vld [vmem:[#allocation8 + $0x338] sm:$0xff]
    %v1068 = vld [vmem:[#allocation8 + $0x340] sm:$0xff]
    %v1069 = vld [vmem:[#allocation8 + $0x348] sm:$0xff]
    %v1070 = vld [vmem:[#allocation8 + $0x350] sm:$0xff]
    %v1071 = vld [vmem:[#allocation8 + $0x358] sm:$0xff]
    %v1072 = vld [vmem:[#allocation8 + $0x360] sm:$0xff]
    %v1073 = vld [vmem:[#allocation8 + $0x368] sm:$0xff]
    %v1074 = vld [vmem:[#allocation8 + $0x370] sm:$0xff]
    %v1075 = vld [vmem:[#allocation8 + $0x378] sm:$0xff]
    %v1076 = vld [vmem:[#allocation8 + $0x380] sm:$0xff]
    %v1077 = vld [vmem:[#allocation8 + $0x388] sm:$0xff]
    %v1078 = vld [vmem:[#allocation8 + $0x390] sm:$0xff]
    %v1079 = vld [vmem:[#allocation8 + $0x398] sm:$0xff]
    %v1080 = vld [vmem:[#allocation8 + $0x3a0] sm:$0xff]
    %v1081 = vld [vmem:[#allocation8 + $0x3a8] sm:$0xff]
    %v1082 = vld [vmem:[#allocation8 + $0x3b0] sm:$0xff]
    %v1083 = vld [vmem:[#allocation8 + $0x3b8] sm:$0xff]
    %v1084 = vld [vmem:[#allocation8 + $0x3c0] sm:$0xff]
    %v1085 = vld [vmem:[#allocation8 + $0x3c8] sm:$0xff]
    %v1086 = vld [vmem:[#allocation8 + $0x3d0] sm:$0xff]
    %v1087 = vld [vmem:[#allocation8 + $0x3d8] sm:$0xff]
    %v1088 = vld [vmem:[#allocation8 + $0x3e0] sm:$0xff]
    %v1089 = vld [vmem:[#allocation8 + $0x3e8] sm:$0xff]
    %v1090 = vld [vmem:[#allocation8 + $0x3f0] sm:$0xff]
    %v1091 = vld [vmem:[#allocation8 + $0x3f8] sm:$0xff]
    %v1092 = vlaneseq
    %v1093 = vshrl.u32 %v1092, 7
    %v1094 = vsub.s32 2, %v1093
    %v1095 = vrot.slane %v90, %v1094
    %v1096 = vlaneseq
    %v1097 = vshrl.u32 %v1096, 7
    %v1098 = vsub.s32 6, %v1097
    %v1099 = vrot.slane %v90, %v1098
    %1102 = vmatprep.subr.mxu0 %v965
    %1103 = vmatpush1.msra.mxu0 %v964
    %1104 = vmatprep.subr.mxu0 %v967
    %1105 = vmatpush1.msra.mxu0 %v966
    %1106 = vmatprep.subr.mxu0 %v969
    %1107 = vmatpush1.msra.mxu0 %v968
    %1108 = vmatprep.subr.mxu0 %v971
    %1109 = vmatpush1.msra.mxu0 %v970
    %1110 = vmatprep.subr.mxu0 %v973
    %1111 = vmatpush1.msra.mxu0 %v972
    %1112 = vmatprep.subr.mxu0 %v975
    %1113 = vmatpush1.msra.mxu0 %v974
    %1114 = vmatprep.subr.mxu0 %v977
    %1115 = vmatpush1.msra.mxu0 %v976
    %1116 = vmatprep.subr.mxu0 %v979
    %1117 = vmatpush1.msra.mxu0 %v978
    %1118 = vmatprep.subr.mxu0 %v981
    %1119 = vmatpush1.msra.mxu0 %v980
    %1120 = vmatprep.subr.mxu0 %v983
    %1121 = vmatpush1.msra.mxu0 %v982
    %1122 = vmatprep.subr.mxu0 %v985
    %1123 = vmatpush1.msra.mxu0 %v984
    %1124 = vmatprep.subr.mxu0 %v987
    %1125 = vmatpush1.msra.mxu0 %v986
    %1126 = vmatprep.subr.mxu0 %v989
    %1127 = vmatpush1.msra.mxu0 %v988
    %1128 = vmatprep.subr.mxu0 %v991
    %1129 = vmatpush1.msra.mxu0 %v990
    %1130 = vmatprep.subr.mxu0 %v993
    %1131 = vmatpush1.msra.mxu0 %v992
    %1132 = vmatprep.subr.mxu0 %v995
    %1133 = vmatpush1.msra.mxu0 %v994
    %1134 = vmatprep.subr.mxu0 %v997
    %1135 = vmatpush1.msra.mxu0 %v996
    %1136 = vmatprep.subr.mxu0 %v999
    %1137 = vmatpush1.msra.mxu0 %v998
    %1138 = vmatprep.subr.mxu0 %v1001
    %1139 = vmatpush1.msra.mxu0 %v1000
    %1140 = vmatprep.subr.mxu0 %v1003
    %1141 = vmatpush1.msra.mxu0 %v1002
    %1142 = vmatprep.subr.mxu0 %v1005
    %1143 = vmatpush1.msra.mxu0 %v1004
    %1144 = vmatprep.subr.mxu0 %v1007
    %1145 = vmatpush1.msra.mxu0 %v1006
    %1146 = vmatprep.subr.mxu0 %v1009
    %1147 = vmatpush1.msra.mxu0 %v1008
    %1148 = vmatprep.subr.mxu0 %v1011
    %1149 = vmatpush1.msra.mxu0 %v1010
    %1150 = vmatprep.subr.mxu0 %v1013
    %1151 = vmatpush1.msra.mxu0 %v1012
    %1152 = vmatprep.subr.mxu0 %v1015
    %1153 = vmatpush1.msra.mxu0 %v1014
    %1154 = vmatprep.subr.mxu0 %v1017
    %1155 = vmatpush1.msra.mxu0 %v1016
    %1156 = vmatprep.subr.mxu0 %v1019
    %1157 = vmatpush1.msra.mxu0 %v1018
    %1158 = vmatprep.subr.mxu0 %v1021
    %1159 = vmatpush1.msra.mxu0 %v1020
    %1160 = vmatprep.subr.mxu0 %v1023
    %1161 = vmatpush1.msra.mxu0 %v1022
    %1162 = vmatprep.subr.mxu0 %v1025
    %1163 = vmatpush1.msra.mxu0 %v1024
    %1164 = vmatprep.subr.mxu0 %v1027
    %1165 = vmatpush1.msra.mxu0 %v1026
    %1166 = vmatprep.mubr.f32.mxu0 %v961
    %1167 = vmatmul.mubr.f32.gmra.mrb[0].mxu0 %v960
    %v1168 = vpop.f32.mrb[0].mxu0
    %v1169 = vadd.f32 %v1095, %v1168
    %v1170 = vpop.f32.mrb[0].mxu0
    %v1171 = vadd.f32 %v1099, %v1170
    %1172 = vdwg.mxu0
    %1173 = vmatprep.subr.mxu0 %v1029
    %1174 = vmatpush1.msra.mxu0 %v1028
    %1175 = vmatprep.subr.mxu0 %v1031
    %1176 = vmatpush1.msra.mxu0 %v1030
    %1177 = vmatprep.subr.mxu0 %v1033
    %1178 = vmatpush1.msra.mxu0 %v1032
    %1179 = vmatprep.subr.mxu0 %v1035
    %1180 = vmatpush1.msra.mxu0 %v1034
    %1181 = vmatprep.subr.mxu0 %v1037
    %1182 = vmatpush1.msra.mxu0 %v1036
    %1183 = vmatprep.subr.mxu0 %v1039
    %1184 = vmatpush1.msra.mxu0 %v1038
    %1185 = vmatprep.subr.mxu0 %v1041
    %1186 = vmatpush1.msra.mxu0 %v1040
    %1187 = vmatprep.subr.mxu0 %v1043
    %1188 = vmatpush1.msra.mxu0 %v1042
    %1189 = vmatprep.subr.mxu0 %v1045
    %1190 = vmatpush1.msra.mxu0 %v1044
    %1191 = vmatprep.subr.mxu0 %v1047
    %1192 = vmatpush1.msra.mxu0 %v1046
    %1193 = vmatprep.subr.mxu0 %v1049
    %1194 = vmatpush1.msra.mxu0 %v1048
    %1195 = vmatprep.subr.mxu0 %v1051
    %1196 = vmatpush1.msra.mxu0 %v1050
    %1197 = vmatprep.subr.mxu0 %v1053
    %1198 = vmatpush1.msra.mxu0 %v1052
    %1199 = vmatprep.subr.mxu0 %v1055
    %1200 = vmatpush1.msra.mxu0 %v1054
    %1201 = vmatprep.subr.mxu0 %v1057
    %1202 = vmatpush1.msra.mxu0 %v1056
    %1203 = vmatprep.subr.mxu0 %v1059
    %1204 = vmatpush1.msra.mxu0 %v1058
    %1205 = vmatprep.subr.mxu0 %v1061
    %1206 = vmatpush1.msra.mxu0 %v1060
    %1207 = vmatprep.subr.mxu0 %v1063
    %1208 = vmatpush1.msra.mxu0 %v1062
    %1209 = vmatprep.subr.mxu0 %v1065
    %1210 = vmatpush1.msra.mxu0 %v1064
    %1211 = vmatprep.subr.mxu0 %v1067
    %1212 = vmatpush1.msra.mxu0 %v1066
    %1213 = vmatprep.subr.mxu0 %v1069
    %1214 = vmatpush1.msra.mxu0 %v1068
    %1215 = vmatprep.subr.mxu0 %v1071
    %1216 = vmatpush1.msra.mxu0 %v1070
    %1217 = vmatprep.subr.mxu0 %v1073
    %1218 = vmatpush1.msra.mxu0 %v1072
    %1219 = vmatprep.subr.mxu0 %v1075
    %1220 = vmatpush1.msra.mxu0 %v1074
    %1221 = vmatprep.subr.mxu0 %v1077
    %1222 = vmatpush1.msra.mxu0 %v1076
    %1223 = vmatprep.subr.mxu0 %v1079
    %1224 = vmatpush1.msra.mxu0 %v1078
    %1225 = vmatprep.subr.mxu0 %v1081
    %1226 = vmatpush1.msra.mxu0 %v1080
    %1227 = vmatprep.subr.mxu0 %v1083
    %1228 = vmatpush1.msra.mxu0 %v1082
    %1229 = vmatprep.subr.mxu0 %v1085
    %1230 = vmatpush1.msra.mxu0 %v1084
    %1231 = vmatprep.subr.mxu0 %v1087
    %1232 = vmatpush1.msra.mxu0 %v1086
    %1233 = vmatprep.subr.mxu0 %v1089
    %1234 = vmatpush1.msra.mxu0 %v1088
    %1235 = vmatprep.subr.mxu0 %v1091
    %1236 = vmatpush1.msra.mxu0 %v1090
    %1237 = vmatprep.mubr.f32.mxu0 %v963
    %1238 = vmatmul.mubr.f32.gmra.mrb[0].mxu0 %v962
    %v1239 = vpop.f32.mrb[0].mxu0
    %v1240 = vadd.f32 %v1169, %v1239
    %v1241 = vpop.f32.mrb[0].mxu0
    %v1242 = vadd.f32 %v1171, %v1241
    %1243 = vdwg.mxu0
    %v1244 = vmax.f32 %v1240, 0.0
    %v1245 = vmax.f32 %v1242, 0.0
    %v1246 = vld [vmem:[#allocation10] sm:$0xff]
    %v1247 = vld [vmem:[#allocation10 + $0x8] sm:$0xff]
    %v1248 = vld [vmem:[#allocation10 + $0x10] sm:$0xff]
    %v1249 = vld [vmem:[#allocation10 + $0x18] sm:$0xff]
    %v1250 = vld [vmem:[#allocation10 + $0x20] sm:$0xff]
    %v1251 = vld [vmem:[#allocation10 + $0x28] sm:$0xff]
    %v1252 = vld [vmem:[#allocation10 + $0x30] sm:$0xff]
    %v1253 = vld [vmem:[#allocation10 + $0x38] sm:$0xff]
    %v1254 = vld [vmem:[#allocation10 + $0x40] sm:$0xff]
    %v1255 = vld [vmem:[#allocation10 + $0x48] sm:$0xff]
    %v1256 = vld [vmem:[#allocation10 + $0x50] sm:$0xff]
    %v1257 = vld [vmem:[#allocation10 + $0x58] sm:$0xff]
    %v1258 = vld [vmem:[#allocation10 + $0x60] sm:$0xff]
    %v1259 = vld [vmem:[#allocation10 + $0x68] sm:$0xff]
    %v1260 = vld [vmem:[#allocation10 + $0x70] sm:$0xff]
    %v1261 = vld [vmem:[#allocation10 + $0x78] sm:$0xff]
    %v1262 = vld [vmem:[#allocation10 + $0x80] sm:$0xff]
    %v1263 = vld [vmem:[#allocation10 + $0x88] sm:$0xff]
    %v1264 = vld [vmem:[#allocation10 + $0x90] sm:$0xff]
    %v1265 = vld [vmem:[#allocation10 + $0x98] sm:$0xff]
    %v1266 = vld [vmem:[#allocation10 + $0xa0] sm:$0xff]
    %v1267 = vld [vmem:[#allocation10 + $0xa8] sm:$0xff]
    %v1268 = vld [vmem:[#allocation10 + $0xb0] sm:$0xff]
    %v1269 = vld [vmem:[#allocation10 + $0xb8] sm:$0xff]
    %v1270 = vld [vmem:[#allocation10 + $0xc0] sm:$0xff]
    %v1271 = vld [vmem:[#allocation10 + $0xc8] sm:$0xff]
    %v1272 = vld [vmem:[#allocation10 + $0xd0] sm:$0xff]
    %v1273 = vld [vmem:[#allocation10 + $0xd8] sm:$0xff]
    %v1274 = vld [vmem:[#allocation10 + $0xe0] sm:$0xff]
    %v1275 = vld [vmem:[#allocation10 + $0xe8] sm:$0xff]
    %v1276 = vld [vmem:[#allocation10 + $0xf0] sm:$0xff]
    %v1277 = vld [vmem:[#allocation10 + $0xf8] sm:$0xff]
    %v1278 = vlaneseq
    %v1279 = vshrl.u32 %v1278, 7
    %v1280 = vsub.s32 3, %v1279
    %v1281 = vrot.slane %v90, %v1280
    %1283 = vmatprep.subr.mxu0 0.0
    %1284 = vmatpush1.msra.mxu0 %v1246
    %1285 = vmatprep.subr.mxu0 0.0
    %1286 = vmatpush1.msra.mxu0 %v1247
    %1287 = vmatprep.subr.mxu0 0.0
    %1288 = vmatpush1.msra.mxu0 %v1248
    %1289 = vmatprep.subr.mxu0 0.0
    %1290 = vmatpush1.msra.mxu0 %v1249
    %1291 = vmatprep.subr.mxu0 0.0
    %1292 = vmatpush1.msra.mxu0 %v1250
    %1293 = vmatprep.subr.mxu0 0.0
    %1294 = vmatpush1.msra.mxu0 %v1251
    %1295 = vmatprep.subr.mxu0 0.0
    %1296 = vmatpush1.msra.mxu0 %v1252
    %1297 = vmatprep.subr.mxu0 0.0
    %1298 = vmatpush1.msra.mxu0 %v1253
    %1299 = vmatprep.subr.mxu0 0.0
    %1300 = vmatpush1.msra.mxu0 %v1254
    %1301 = vmatprep.subr.mxu0 0.0
    %1302 = vmatpush1.msra.mxu0 %v1255
    %1303 = vmatprep.subr.mxu0 0.0
    %1304 = vmatpush1.msra.mxu0 %v1256
    %1305 = vmatprep.subr.mxu0 0.0
    %1306 = vmatpush1.msra.mxu0 %v1257
    %1307 = vmatprep.subr.mxu0 0.0
    %1308 = vmatpush1.msra.mxu0 %v1258
    %1309 = vmatprep.subr.mxu0 0.0
    %1310 = vmatpush1.msra.mxu0 %v1259
    %1311 = vmatprep.subr.mxu0 0.0
    %1312 = vmatpush1.msra.mxu0 %v1260
    %1313 = vmatprep.subr.mxu0 0.0
    %1314 = vmatpush1.msra.mxu0 %v1261
    %1315 = vmatprep.subr.mxu0 0.0
    %1316 = vmatpush1.msra.mxu0 %v1262
    %1317 = vmatprep.subr.mxu0 0.0
    %1318 = vmatpush1.msra.mxu0 %v1263
    %1319 = vmatprep.subr.mxu0 0.0
    %1320 = vmatpush1.msra.mxu0 %v1264
    %1321 = vmatprep.subr.mxu0 0.0
    %1322 = vmatpush1.msra.mxu0 %v1265
    %1323 = vmatprep.subr.mxu0 0.0
    %1324 = vmatpush1.msra.mxu0 %v1266
    %1325 = vmatprep.subr.mxu0 0.0
    %1326 = vmatpush1.msra.mxu0 %v1267
    %1327 = vmatprep.subr.mxu0 0.0
    %1328 = vmatpush1.msra.mxu0 %v1268
    %1329 = vmatprep.subr.mxu0 0.0
    %1330 = vmatpush1.msra.mxu0 %v1269
    %1331 = vmatprep.subr.mxu0 0.0
    %1332 = vmatpush1.msra.mxu0 %v1270
    %1333 = vmatprep.subr.mxu0 0.0
    %1334 = vmatpush1.msra.mxu0 %v1271
    %1335 = vmatprep.subr.mxu0 0.0
    %1336 = vmatpush1.msra.mxu0 %v1272
    %1337 = vmatprep.subr.mxu0 0.0
    %1338 = vmatpush1.msra.mxu0 %v1273
    %1339 = vmatprep.subr.mxu0 0.0
    %1340 = vmatpush1.msra.mxu0 %v1274
    %1341 = vmatprep.subr.mxu0 0.0
    %1342 = vmatpush1.msra.mxu0 %v1275
    %1343 = vmatprep.subr.mxu0 0.0
    %1344 = vmatpush1.msra.mxu0 %v1276
    %1345 = vmatprep.subr.mxu0 0.0
    %1346 = vmatpush1.msra.mxu0 %v1277
    %1347 = vmatprep.mubr.f32.mxu0 %v1245
    %1348 = vmatmul.mubr.f32.gmra.mrb[0].mxu0 %v1244
    %v1349 = vpop.f32.mrb[0].mxu0
    %v1350 = vadd.f32 %v1281, %v1349
    %v1351 = vpop.f32.mrb[0].mxu0
    %1352 = vdwg.mxu0
    %1353 = vst [vmem:[#allocation11] sm:$0x1] %v1350
    // Predicated region
    $region46: #{tpu_custom_call.1} parent=1 // pred_check
      _
    $region47: #{tpu_custom_call.1} parent=1 // pred_check_branch
      %1355 = sbr.rel (0) target = $region49
    $region48: #{tpu_custom_call.1} parent=1 // pred_region
      %s1357 = ssub.s32 16, 16
      %1358 = vsyncadd [#allocation4], %s1357
      %s1360 = sshll.u32 [#allocation11], 4
      %s1361 = int_to_ptr.vmem [resolvable:$true] %s1360
      %1363 = dma.vmem_to_hbm [thread:$0]  %s1361, 16, %s6, [#allocation4]
    $region49: #{tpu_custom_call.1} parent=1 // pred_fallthru
      _
    // Predicated region
    $region50: #{tpu_custom_call.1} parent=1 // pred_check
      _
    $region51: #{tpu_custom_call.1} parent=1 // pred_check_branch
      %1365 = sbr.rel (0) target = $region53
    $region52: #{tpu_custom_call.1} parent=1 // pred_region
      %1366 = dma.done [#allocation4], 16
    $region53: #{tpu_custom_call.1} parent=1 // pred_fallthru
      _
    %1367 = vsyncpa [#allocation3], 1
    %1368 = vsyncpa [#allocation6], 1
    %1369 = vsyncpa [#allocation9], 1
    %1370 = vsyncpa [#allocation4], 1

</llo_original>
